<compile_context>
chip_gen: v7x
topology: tpu7x:2x2x1
jax: 0.10.0
libtpu: 0.0.40
codegen_flags: <defaults>
</compile_context>

<pallas_src>
import functools
import math

import numpy as np

import jax
import jax.numpy as jnp
from jax import lax
from jax.experimental import pallas as pl
from jax.experimental.pallas import tpu as pltpu


def _struct_pruning_kernel(x_ref, w_ref, b_ref, mask_ref, out_ref, l0_ref,
                           *, tb, f, n_valid, zeta, gamma, l0_shift):
    x = x_ref[...]                         # (TB*F, D)   (batch dim squeezed)
    w = w_ref[...]                         # (D, H)
    bias = b_ref[...]                      # (1, H) f32

    # LinearTransform: ONE fused matmul over all TB*F rows + ReLU (f32 accumulate).
    lin = jnp.dot(x, w, preferred_element_type=jnp.float32) + bias
    lin = jnp.maximum(lin, 0.0)            # (TB*F, H) f32

    h = lin.shape[-1]
    # Layout-preserving split of the sublane dim (TB*F -> TB x F, lanes kept).
    lin3 = lin.reshape(tb, f, h)           # (TB, F, H)

    # DotWeight: batched self dot-product, contracting dims last (no explicit
    # transpose).  NOTE: lowers to TB small MXU matmuls; if a profile shows
    # MXU-cadence-bound steps at large TB, switch to a per-128-row-group gram.
    score = lax.dot_general(
        lin3, lin3,
        dimension_numbers=(((2,), (2,)), ((0,), (0,))),
        preferred_element_type=jnp.float32)            # (TB, F, F)

    # Single relayout to the lane-dense packed layout:
    #   score_p[i, b*F + j] = score[b, i, j]
    # so every elementwise op below runs at full lane width and the output is
    # written with one unmasked full-lane store.
    score_p = jnp.transpose(score, (1, 0, 2)).reshape(f, tb * f)   # (F, TB*F)

    # torch.triu(ones(F, F), 1), pre-tiled into the packed layout at trace time.
    mask_p = mask_ref[...]                                         # (F, TB*F)

    # Hard-concrete gate (deterministic / eval path) — f32 on all generations.
    gate = jnp.clip(jax.nn.sigmoid(score_p) * (zeta - gamma) + gamma, 0.0, 1.0)
    out_ref[...] = mask_p * gate                                   # one packed store

    # Batch-validity mask for zero-padded batches: padding lives at the tail of
    # the last block, so the valid packed columns form a prefix.
    col = lax.broadcasted_iota(jnp.int32, (f, tb * f), 1)
    nvalid_cols = jnp.minimum(n_valid - pl.program_id(0) * tb, tb) * f
    valid = (col < nvalid_cols).astype(jnp.float32)                # (F, TB*F)

    # Expected L0 penalty partial sum (constant beta*log(-gamma/zeta) folded at
    # trace time).  Per-block partials keep the grid axis 'parallel'; the
    # wrapper finishes the mean.
    l0 = jax.nn.sigmoid(score_p - l0_shift)
    l0_ref[...] = jnp.reshape(jnp.sum(mask_p * valid * l0), (1, 1))


def _pick_tb(batch, f, d, h, elt_bytes, rows_target=512, vmem_budget=24 << 20):
    """Pick TB so TB*F targets `rows_target` rows per grid step.

    rows_target: sweep 512-2048 on real shapes; 512 default because the batched
    similarity (TB small MXU matmuls) scales linearly with TB while per-step
    overhead is fixed.  NB >= 2 is preserved so the 'parallel' grid axis keeps
    both v7x TensorCores busy.  VMEM budget stays under the 32 MiB scoped
    default (v7x: 64 MiB physical per TC, half of v5e/v6e).
    """
    tb = max(1, rows_target // f)
    tb = min(tb, max(1, -(-batch // 2)))       # keep NB >= 2 (ceil(B/2) cap)
    while tb > 1:
        per_step = 2 * (tb * f * d * elt_bytes     # x block (double-buffered)
                        + 2 * f * tb * f * 4       # packed gate slab + triu mask
                        + d * h * elt_bytes + h * 4 + 8)
        if per_step <= vmem_budget:
            break
        tb //= 2
    return tb


def struct_pruning_forward(indicator, w, b, *, beta, zeta=1.1, gamma=-0.1,
                           matmul_dtype=None):
    """Returns (L0Out, L0) matching StructPruningLayer.forward / self.L0.

    matmul_dtype: set to jnp.bfloat16 for inference to halve indicator/weight
    HBM traffic and use the native bf16 MXU path on v5e/v6e/v7x (accumulation
    and all gate/L0 math stay f32).  Do NOT plan on int8 for v7x — its MXU has
    no int path.  Default None keeps full f32 parity with the reference.
    """
    B, F, D = indicator.shape
    H = w.shape[1]

    compute_dtype = jnp.float32 if matmul_dtype is None else matmul_dtype
    elt_bytes = jnp.dtype(compute_dtype).itemsize

    TB = _pick_tb(B, F, D, H, elt_bytes)
    NB = -(-B // TB)                 # ceil
    B_pad = NB * TB

    x = indicator
    if B_pad != B:
        # Pad awkward batch sizes instead of shrinking TB; padded batches are
        # excluded from L0 in-kernel and dropped from the output below.
        x = jnp.pad(x, ((0, B_pad - B), (0, 0), (0, 0)))
    x = x.reshape(NB, TB * F, D).astype(compute_dtype)
    w2 = w.astype(compute_dtype)
    b2 = b.reshape(1, H).astype(jnp.float32)

    # triu(ones(F,F), 1) pre-tiled into the packed (F, TB*F) layout (trace-time
    # NumPy constant, passed as a tiny resident input).
    tri = np.triu(np.ones((F, F), np.float32), 1)
    mask_packed = jnp.asarray(np.tile(tri, (1, TB)))

    # Fold constants at trace time (no per-step EUP log).
    l0_shift = float(beta) * math.log(-float(gamma) / float(zeta))

    kernel = functools.partial(
        _struct_pruning_kernel, tb=TB, f=F, n_valid=B,
        zeta=float(zeta), gamma=float(gamma), l0_shift=l0_shift)

    out_packed, l0_part = pl.pallas_call(
        kernel,
        out_shape=(
            jax.ShapeDtypeStruct((NB, F, TB * F), jnp.float32),  # lane-dense slabs
            jax.ShapeDtypeStruct((NB, 1, 1), jnp.float32),       # per-block L0 sums
        ),
        grid_spec=pltpu.PrefetchScalarGridSpec(
            num_scalar_prefetch=0,
            grid=(NB,),
            in_specs=[
                # If xprof still shows exposed input DMA at large TB, add
                # pipeline_mode=pl.Buffered(3) here.
                pl.BlockSpec((None, TB * F, D), lambda i: (i, 0, 0)),
                pl.BlockSpec((D, H), lambda i: (0, 0)),          # resident weights
                pl.BlockSpec((1, H), lambda i: (0, 0)),          # resident bias
                pl.BlockSpec((F, TB * F), lambda i: (0, 0)),     # packed triu mask
            ],
            out_specs=[
                pl.BlockSpec((None, F, TB * F), lambda i: (i, 0, 0)),
                pl.BlockSpec((None, 1, 1), lambda i: (i, 0, 0)),
            ],
        ),
        compiler_params=pltpu.CompilerParams(
            dimension_semantics=("parallel",)),      # no cross-step state
    )(x, w2, b2, mask_packed)

    # Unpack the lane-dense slab: out_packed[nb, i, b*F + j] -> (B, F, F).
    l0_out = (out_packed.reshape(NB, F, TB, F)
              .transpose(0, 2, 1, 3)
              .reshape(B_pad, F, F)[:B])
    l0_mean = jnp.sum(l0_part) / jnp.float32(B * F * F)
    return l0_out, l0_mean


def _reference(indicator, w, b, *, beta, zeta=1.1, gamma=-0.1):
    lin = jnp.maximum(indicator @ w + b, 0.0)
    score = jnp.einsum("bfh,bgh->bfg", lin, lin)
    F = indicator.shape[-2]
    mask = jnp.triu(jnp.ones((F, F), jnp.float32), 1)
    gate = jnp.clip(jax.nn.sigmoid(score) * (zeta - gamma) + gamma, 0.0, 1.0)
    l0_out = mask * gate
    l0 = jax.nn.sigmoid(score - beta * jnp.log(-gamma / zeta))
    return l0_out, jnp.mean(mask * l0)


if __name__ == "__main__":
    # batch, featureNumb, inDim, outDim
    B, F, D, H = 32, 8, 32, 16
    beta, zeta, gamma = 0.66, 1.1, -0.1

    key = jax.random.PRNGKey(0)
    k_ind, k_w, k_b = jax.random.split(key, 3)
    indicator = jax.random.normal(k_ind, (B, F, D), jnp.float32)
    # nn.Linear(inDim, outDim) weights, stored pre-transposed as (inDim, outDim)
    w = jax.random.normal(k_w, (D, H), jnp.float32) * (1.0 / jnp.sqrt(D))
    b = jax.random.normal(k_b, (H,), jnp.float32) * 0.01

    # --- f32 path: bit-tight against the pure-JAX reference ---------------
    l0_out, l0 = struct_pruning_forward(indicator, w, b,
                                        beta=beta, zeta=zeta, gamma=gamma)
    jax.block_until_ready(l0_out)
    jax.block_until_ready(l0)
    ref_out, ref_l0 = _reference(indicator, w, b,
                                 beta=beta, zeta=zeta, gamma=gamma)
    assert jnp.allclose(l0_out, ref_out, rtol=1e-5, atol=1e-5)
    assert jnp.allclose(l0, ref_l0, rtol=1e-5, atol=1e-5)

    # --- bf16 matmul path (halved HBM DMA, native bf16 MXU) ----------------
    # Compared against the reference evaluated on bf16-rounded inputs so both
    # sides see identical operands (isolates the kernel numerics).
    ind_bf = indicator.astype(jnp.bfloat16).astype(jnp.float32)
    w_bf = w.astype(jnp.bfloat16).astype(jnp.float32)
    l0_out_bf, l0_bf = struct_pruning_forward(
        indicator, w, b, beta=beta, zeta=zeta, gamma=gamma,
        matmul_dtype=jnp.bfloat16)
    jax.block_until_ready(l0_out_bf)
    ref_out_bf, ref_l0_bf = _reference(ind_bf, w_bf, b,
                                       beta=beta, zeta=zeta, gamma=gamma)
    assert jnp.allclose(l0_out_bf, ref_out_bf, rtol=1e-3, atol=1e-3)
    assert jnp.allclose(l0_bf, ref_l0_bf, rtol=1e-3, atol=1e-3)

    # --- ragged batch: exercises the pad + in-kernel L0-mask path ----------
    B2 = 31
    ind2 = indicator[:B2]
    l0_out2, l02 = struct_pruning_forward(ind2, w, b,
                                          beta=beta, zeta=zeta, gamma=gamma)
    jax.block_until_ready(l0_out2)
    ref_out2, ref_l02 = _reference(ind2, w, b,
                                   beta=beta, zeta=zeta, gamma=gamma)
    assert jnp.allclose(l0_out2, ref_out2, rtol=1e-5, atol=1e-5)
    assert jnp.allclose(l02, ref_l02, rtol=1e-5, atol=1e-5)

    print("KERNEL_OK")
</pallas_src>

<mosaic_0001>
module attributes {stable_mosaic.version = 11 : i64} {
  func.func @_struct_pruning_kernel(%arg0: i32, %arg1: memref<1x128x32xf32, #tpu.memory_space<vmem>>, %arg2: memref<32x16xf32, #tpu.memory_space<vmem>>, %arg3: memref<1x16xf32, #tpu.memory_space<vmem>>, %arg4: memref<8x128xf32, #tpu.memory_space<vmem>>, %arg5: memref<1x8x128xf32, #tpu.memory_space<vmem>>, %arg6: memref<1x1x1xf32, #tpu.memory_space<vmem>>) attributes {dimension_semantics = [#tpu.dimension_semantics<parallel>], iteration_bounds = array<i64: 2>, scalar_prefetch = 0 : i64, scratch_operands = 0 : i64, tpu.core_type = #tpu.core_type<tc>, window_params = [{transform_indices = @transform_0, window_bounds = array<i64: 1, 128, 32>}, {pipeline_mode = #tpu.pipeline_mode<synchronous>, transform_indices = @transform_1, window_bounds = array<i64: 32, 16>}, {pipeline_mode = #tpu.pipeline_mode<synchronous>, transform_indices = @transform_2, window_bounds = array<i64: 1, 16>}, {pipeline_mode = #tpu.pipeline_mode<synchronous>, transform_indices = @transform_3, window_bounds = array<i64: 8, 128>}, {transform_indices = @transform_4, window_bounds = array<i64: 1, 8, 128>}, {transform_indices = @transform_5, window_bounds = array<i64: 1, 1, 1>}]} {
    %c0 = arith.constant 0 : index
    %c0_0 = arith.constant 0 : index
    %c0_1 = arith.constant 0 : index
    %0 = vector.load %arg1[%c0, %c0_0, %c0_1] : memref<1x128x32xf32, #tpu.memory_space<vmem>>, vector<1x128x32xf32>
    %1 = vector.shape_cast %0 : vector<1x128x32xf32> to vector<128x32xf32>
    %c0_2 = arith.constant 0 : index
    %c0_3 = arith.constant 0 : index
    %2 = vector.load %arg2[%c0_2, %c0_3] : memref<32x16xf32, #tpu.memory_space<vmem>>, vector<32x16xf32>
    %c0_4 = arith.constant 0 : index
    %c0_5 = arith.constant 0 : index
    %3 = vector.load %arg3[%c0_4, %c0_5] : memref<1x16xf32, #tpu.memory_space<vmem>>, vector<1x16xf32>
    %cst = arith.constant dense<0.000000e+00> : vector<128x16xf32>
    %4 = tpu.matmul %1, %2, %cst {dimension_numbers = #tpu.dot_dimension_numbers<[1], [0], [0], [1], [0, 0, 1, 1], [], []>} : vector<128x32xf32>, vector<32x16xf32>, vector<128x16xf32> -> vector<128x16xf32>
    %5 = vector.broadcast %3 : vector<1x16xf32> to vector<128x16xf32>
    %6 = arith.addf %4, %5 : vector<128x16xf32>
    %cst_6 = arith.constant 0.000000e+00 : f32
    %7 = vector.broadcast %cst_6 : f32 to vector<128x16xf32>
    %8 = arith.maximumf %6, %7 : vector<128x16xf32>
    %9 = vector.shape_cast %8 : vector<128x16xf32> to vector<16x8x16xf32>
    %cst_7 = arith.constant dense<0.000000e+00> : vector<16x8x8xf32>
    %10 = tpu.matmul %9, %9, %cst_7 {dimension_numbers = #tpu.dot_dimension_numbers<[2], [2], [1], [1], [0, 0, 0, 1, 1, 1], [0], [0]>} : vector<16x8x16xf32>, vector<16x8x16xf32>, vector<16x8x8xf32> -> vector<16x8x8xf32>
    %11 = tpu.transpose %10, [1, 0, 2] : vector<16x8x8xf32> -> vector<8x16x8xf32>
    %12 = vector.shape_cast %11 : vector<8x16x8xf32> to vector<8x128xf32>
    %c0_8 = arith.constant 0 : index
    %c0_9 = arith.constant 0 : index
    %13 = vector.load %arg4[%c0_8, %c0_9] : memref<8x128xf32, #tpu.memory_space<vmem>>, vector<8x128xf32>
    %14 = arith.negf %12 : vector<8x128xf32>
    %15 = math.exp %14 : vector<8x128xf32>
    %cst_10 = arith.constant 1.000000e+00 : f32
    %16 = vector.broadcast %cst_10 : f32 to vector<8x128xf32>
    %17 = arith.addf %16, %15 : vector<8x128xf32>
    %18 = arith.divf %16, %17 : vector<8x128xf32>
    %cst_11 = arith.constant 1.200000e+00 : f32
    %19 = vector.broadcast %cst_11 : f32 to vector<8x128xf32>
    %20 = arith.mulf %18, %19 : vector<8x128xf32>
    %cst_12 = arith.constant -1.000000e-01 : f32
    %21 = vector.broadcast %cst_12 : f32 to vector<8x128xf32>
    %22 = arith.addf %20, %21 : vector<8x128xf32>
    %cst_13 = arith.constant 0.000000e+00 : f32
    %cst_14 = arith.constant 1.000000e+00 : f32
    %23 = vector.broadcast %cst_13 : f32 to vector<8x128xf32>
    %24 = arith.maximumf %23, %22 : vector<8x128xf32>
    %25 = vector.broadcast %cst_14 : f32 to vector<8x128xf32>
    %26 = arith.minimumf %25, %24 : vector<8x128xf32>
    %27 = arith.mulf %13, %26 : vector<8x128xf32>
    %c0_15 = arith.constant 0 : index
    %c0_16 = arith.constant 0 : index
    %c0_17 = arith.constant 0 : index
    %28 = vector.load %arg5[%c0_15, %c0_16, %c0_17] : memref<1x8x128xf32, #tpu.memory_space<vmem>>, vector<1x8x128xf32>
    %29 = vector.shape_cast %28 : vector<1x8x128xf32> to vector<8x128xf32>
    %30 = vector.shape_cast %27 : vector<8x128xf32> to vector<1x8x128xf32>
    tpu.vector_store %arg5[%c0_15, %c0_16, %c0_17], %30 {strides = array<i32>} : memref<1x8x128xf32, #tpu.memory_space<vmem>>, vector<1x8x128xf32>,
    %31 = tpu.iota {dimensions = array<i32: 1>} : vector<8x128xi32>
    %c16_i32 = arith.constant 16 : i32
    %32 = arith.muli %arg0, %c16_i32 : i32
    %c32_i32 = arith.constant 32 : i32
    %33 = arith.subi %c32_i32, %32 : i32
    %c16_i32_18 = arith.constant 16 : i32
    %34 = arith.minsi %33, %c16_i32_18 : i32
    %c8_i32 = arith.constant 8 : i32
    %35 = arith.muli %34, %c8_i32 : i32
    %36 = vector.broadcast %35 : i32 to vector<8x128xi32>
    %37 = arith.cmpi slt, %31, %36 : vector<8x128xi32>
    %38 = arith.extui %37 : vector<8x128xi1> to vector<8x128xi32>
    %39 = arith.sitofp %38 : vector<8x128xi32> to vector<8x128xf32>
    %cst_19 = arith.constant -1.58261085 : f32
    %40 = vector.broadcast %cst_19 : f32 to vector<8x128xf32>
    %41 = arith.subf %12, %40 : vector<8x128xf32>
    %42 = arith.negf %41 : vector<8x128xf32>
    %43 = math.exp %42 : vector<8x128xf32>
    %cst_20 = arith.constant 1.000000e+00 : f32
    %44 = vector.broadcast %cst_20 : f32 to vector<8x128xf32>
    %45 = arith.addf %44, %43 : vector<8x128xf32>
    %46 = arith.divf %44, %45 : vector<8x128xf32>
    %47 = arith.mulf %13, %39 : vector<8x128xf32>
    %48 = arith.mulf %47, %46 : vector<8x128xf32>
    %49 = vector.shape_cast %48 : vector<8x128xf32> to vector<1x8x128xf32>
    %cst_21 = arith.constant dense<0.000000e+00> : vector<1xf32>
    %50 = vector.multi_reduction <add>, %49, %cst_21 [1, 2] : vector<1x8x128xf32> to vector<1xf32>
    %51 = vector.shape_cast %50 : vector<1xf32> to vector<1x1x1xf32>
    %52 = vector.extract %51[0, 0, 0] : f32 from vector<1x1x1xf32>
    %53 = vector.broadcast %52 : f32 to vector<1x1xf32>
    %c0_22 = arith.constant 0 : index
    %c0_23 = arith.constant 0 : index
    %c0_24 = arith.constant 0 : index
    %54 = vector.load %arg6[%c0_22, %c0_23, %c0_24] : memref<1x1x1xf32, #tpu.memory_space<vmem>>, vector<1x1x1xf32>
    %55 = vector.shape_cast %54 : vector<1x1x1xf32> to vector<1x1xf32>
    %56 = vector.shape_cast %53 : vector<1x1xf32> to vector<1x1x1xf32>
    tpu.vector_store %arg6[%c0_22, %c0_23, %c0_24], %56 {strides = array<i32>} : memref<1x1x1xf32, #tpu.memory_space<vmem>>, vector<1x1x1xf32>,
    return
  }
  func.func @transform_0(%arg0: i32) -> (i32, i32, i32) {
    %c0_i32 = arith.constant 0 : i32
    %c0_i32_0 = arith.constant 0 : i32
    %c0_i32_1 = arith.constant 0 : i32
    return %arg0, %c0_i32, %c0_i32_0 : i32, i32, i32
  }
  func.func @transform_1(%arg0: i32) -> (i32, i32) {
    %c0_i32 = arith.constant 0 : i32
    %c0_i32_0 = arith.constant 0 : i32
    %c0_i32_1 = arith.constant 0 : i32
    return %c0_i32, %c0_i32_0 : i32, i32
  }
  func.func @transform_2(%arg0: i32) -> (i32, i32) {
    %c0_i32 = arith.constant 0 : i32
    %c0_i32_0 = arith.constant 0 : i32
    %c0_i32_1 = arith.constant 0 : i32
    return %c0_i32, %c0_i32_0 : i32, i32
  }
  func.func @transform_3(%arg0: i32) -> (i32, i32) {
    %c0_i32 = arith.constant 0 : i32
    %c0_i32_0 = arith.constant 0 : i32
    %c0_i32_1 = arith.constant 0 : i32
    return %c0_i32, %c0_i32_0 : i32, i32
  }
  func.func @transform_4(%arg0: i32) -> (i32, i32, i32) {
    %c0_i32 = arith.constant 0 : i32
    %c0_i32_0 = arith.constant 0 : i32
    %c0_i32_1 = arith.constant 0 : i32
    return %arg0, %c0_i32, %c0_i32_0 : i32, i32, i32
  }
  func.func @transform_5(%arg0: i32) -> (i32, i32, i32) {
    %c0_i32 = arith.constant 0 : i32
    %c0_i32_0 = arith.constant 0 : i32
    %c0_i32_1 = arith.constant 0 : i32
    return %arg0, %c0_i32, %c0_i32_0 : i32, i32, i32
  }
}

</mosaic_0001>

<llo_original>
// kernel: tpu_custom_call.1
$region0: #{tpu_custom_call.1}
  #allocation0 [shape = 'u32[]', space=smem, size = 0x4, offset = 0x4, fixed_abs, tag = 'smem constant byte address 0x4 - core index']
  #allocation1 [shape = 'u32[144,128]{1,0:T(1,128)}', space=vmem, size = 0x12000, scoped, tag = 'internal scratch']
  %s0 = inlined_call_operand.vmem [shape: f32[2,128,32], index: 0, kind: input, shape index: {}]
  %s1 = inlined_call_operand.vmem [shape: f32[32,16], index: 1, kind: input, shape index: {}]
  %s2 = inlined_call_operand.vmem [shape: f32[1,16], index: 2, kind: input, shape index: {}]
  %s3 = inlined_call_operand.vmem [shape: f32[8,128], index: 3, kind: input, shape index: {}]
  %s4 = inlined_call_operand.hbm [shape: f32[2,8,128], index: 4, kind: output, shape index: {0}]
  %s5 = inlined_call_operand.vmem [shape: f32[2,1,1], index: 5, kind: output, shape index: {1}]
  %6 = xla_tuple %s4, %s5
  %s7 = sld [smem:[#allocation0]]
  $region57: #{tpu_custom_call.1} parent=0
    _
  %s9 = ssub.s32 1, %s7
  %s10 = scalar_select 0, %s9, %s7
  $region1: #{tpu_custom_call.1} parent=0
    #allocation2 [shape = 'u8[8192]{0}', space=vmem, size = 0x2000, scoped, tag = 'output window, operand 0']
    #allocation3 [shape = 's32[2]{0}', space=sflag, size = 0x8, scoped, tag = 'scoped memory for tpu_custom_call.1']
    %11 = vsyncpa [#allocation3], 0
    %s12 = scalar_lea.sflag [#allocation3], 1
    %13 = vsyncpa %s12, 0
    loop: start=0, step=1, limit=4
    $region2: #{tpu_custom_call.1} parent=1 // loop_pre_header
      _
    $region3: #{tpu_custom_call.1} parent=1 // loop_header
      %s15 = sphi 0, %s19
      %p16 = scmp.ge.s32.totalorder %s15, 4
      %s25 = sphi 0, %s27
      %s28 = sphi 0, %s25
      %s29 = sphi 0, %s28
      %s45 = sphi 0, %s29
      %s49 = sphi 0, %s49
      %s51 = sphi 0, %s49
      %s52 = sphi 0, %s51
      %s66 = sphi 0, %s52
      %s70 = sphi 0, %s70
      %s72 = sphi 0, %s70
      %s73 = sphi 0, %s72
      %s87 = sphi 0, %s73
      %s91 = sphi 0, %s91
      %s93 = sphi 0, %s91
      %s94 = sphi 0, %s93
      %s108 = sphi 0, %s94
      %s114 = sphi 0, %s116
      %s117 = sphi 0, %s114
      %s118 = sphi 0, %s117
      %s134 = sphi 0, %s118
      %s140 = sphi 0, %s142
      %s143 = sphi 0, %s140
      %s144 = sphi 0, %s143
      %s160 = sphi 0, %s144
    $region4: #{tpu_custom_call.1} parent=1 // loop_header_branch
      %18 = sbr.rel (%p16) target = $region8
    $region5: #{tpu_custom_call.1} parent=1 // loop_body
      %s20 = ssub.s32 %s15, 1
      %s21 = ssub.s32 %s15, 2
      %s22 = sadd.s32 %s15, 1
      %s23 = ssub.s32 %s15, %s22
      %p24 = scmp.eq.s32.totalorder %s23, 0
      %s26 = sadd.s32 %s25, 1
      %s27 = scalar_select %p24, %s25, %s26
      %p30 = pneg %p24
      %p31 = scmp.eq.s32.totalorder %s15, 1
      %p32 = por %p30, %p31
      %p33 = scmp.ne.s32.totalorder %s25, %s28
      %p34 = scmp.eq.s32.totalorder %s15, 0
      %p35 = por %p33, %p34
      %p36 = scmp.ne.s32.totalorder %s25, %s28
      %p37 = scmp.eq.s32.totalorder %s20, 1
      %p38 = por %p36, %p37
      %p39 = scmp.ne.s32.totalorder %s28, %s29
      %p40 = scmp.eq.s32.totalorder %s20, 0
      %p41 = por %p39, %p40
      %p42 = scmp.ne.s32.totalorder %s28, %s29
      %p43 = scmp.eq.s32.totalorder %s21, 1
      %p44 = por %p42, %p43
      %p46 = scmp.ne.s32.totalorder %s29, %s45
      %p47 = scmp.eq.s32.totalorder %s21, 0
      %p48 = por %p46, %p47
      %s50 = sadd.s32 %s49, 1
      %p53 = scmp.eq.s32.totalorder %s15, 1
      %p54 = scmp.ne.s32.totalorder %s49, %s51
      %p55 = scmp.eq.s32.totalorder %s15, 0
      %p56 = por %p54, %p55
      %p57 = scmp.ne.s32.totalorder %s49, %s51
      %p58 = scmp.eq.s32.totalorder %s20, 1
      %p59 = por %p57, %p58
      %p60 = scmp.ne.s32.totalorder %s51, %s52
      %p61 = scmp.eq.s32.totalorder %s20, 0
      %p62 = por %p60, %p61
      %p63 = scmp.ne.s32.totalorder %s51, %s52
      %p64 = scmp.eq.s32.totalorder %s21, 1
      %p65 = por %p63, %p64
      %p67 = scmp.ne.s32.totalorder %s52, %s66
      %p68 = scmp.eq.s32.totalorder %s21, 0
      %p69 = por %p67, %p68
      %s71 = sadd.s32 %s70, 1
      %p74 = scmp.eq.s32.totalorder %s15, 1
      %p75 = scmp.ne.s32.totalorder %s70, %s72
      %p76 = scmp.eq.s32.totalorder %s15, 0
      %p77 = por %p75, %p76
      %p78 = scmp.ne.s32.totalorder %s70, %s72
      %p79 = scmp.eq.s32.totalorder %s20, 1
      %p80 = por %p78, %p79
      %p81 = scmp.ne.s32.totalorder %s72, %s73
      %p82 = scmp.eq.s32.totalorder %s20, 0
      %p83 = por %p81, %p82
      %p84 = scmp.ne.s32.totalorder %s72, %s73
      %p85 = scmp.eq.s32.totalorder %s21, 1
      %p86 = por %p84, %p85
      %p88 = scmp.ne.s32.totalorder %s73, %s87
      %p89 = scmp.eq.s32.totalorder %s21, 0
      %p90 = por %p88, %p89
      %s92 = sadd.s32 %s91, 1
      %p95 = scmp.eq.s32.totalorder %s15, 1
      %p96 = scmp.ne.s32.totalorder %s91, %s93
      %p97 = scmp.eq.s32.totalorder %s15, 0
      %p98 = por %p96, %p97
      %p99 = scmp.ne.s32.totalorder %s91, %s93
      %p100 = scmp.eq.s32.totalorder %s20, 1
      %p101 = por %p99, %p100
      %p102 = scmp.ne.s32.totalorder %s93, %s94
      %p103 = scmp.eq.s32.totalorder %s20, 0
      %p104 = por %p102, %p103
      %p105 = scmp.ne.s32.totalorder %s93, %s94
      %p106 = scmp.eq.s32.totalorder %s21, 1
      %p107 = por %p105, %p106
      %p109 = scmp.ne.s32.totalorder %s94, %s108
      %p110 = scmp.eq.s32.totalorder %s21, 0
      %p111 = por %p109, %p110
      %s112 = ssub.s32 %s15, %s22
      %p113 = scmp.eq.s32.totalorder %s112, 0
      %s115 = sadd.s32 %s114, 1
      %s116 = scalar_select %p113, %s114, %s115
      %p119 = pneg %p113
      %p120 = scmp.eq.s32.totalorder %s15, 1
      %p121 = por %p119, %p120
      %p122 = scmp.ne.s32.totalorder %s114, %s117
      %p123 = scmp.eq.s32.totalorder %s15, 0
      %p124 = por %p122, %p123
      %p125 = scmp.ne.s32.totalorder %s114, %s117
      %p126 = scmp.eq.s32.totalorder %s20, 1
      %p127 = por %p125, %p126
      %p128 = scmp.ne.s32.totalorder %s117, %s118
      %p129 = scmp.eq.s32.totalorder %s20, 0
      %p130 = por %p128, %p129
      %p131 = scmp.ne.s32.totalorder %s117, %s118
      %p132 = scmp.eq.s32.totalorder %s21, 1
      %p133 = por %p131, %p132
      %p135 = scmp.ne.s32.totalorder %s118, %s134
      %p136 = scmp.eq.s32.totalorder %s21, 0
      %p137 = por %p135, %p136
      %s138 = ssub.s32 %s15, %s22
      %p139 = scmp.eq.s32.totalorder %s138, 0
      %s141 = sadd.s32 %s140, 1
      %s142 = scalar_select %p139, %s140, %s141
      %p145 = pneg %p139
      %p146 = scmp.eq.s32.totalorder %s15, 1
      %p147 = por %p145, %p146
      %p148 = scmp.ne.s32.totalorder %s140, %s143
      %p149 = scmp.eq.s32.totalorder %s15, 0
      %p150 = por %p148, %p149
      %p151 = scmp.ne.s32.totalorder %s140, %s143
      %p152 = scmp.eq.s32.totalorder %s20, 1
      %p153 = por %p151, %p152
      %p154 = scmp.ne.s32.totalorder %s143, %s144
      %p155 = scmp.eq.s32.totalorder %s20, 0
      %p156 = por %p154, %p155
      %p157 = scmp.ne.s32.totalorder %s143, %s144
      %p158 = scmp.eq.s32.totalorder %s21, 1
      %p159 = por %p157, %p158
      %p161 = scmp.ne.s32.totalorder %s144, %s160
      %p162 = scmp.eq.s32.totalorder %s21, 0
      %p163 = por %p161, %p162
      %p164 = scmp.le.s32.totalorder 1, %s15
      %p165 = scmp.lt.s32.totalorder %s15, 3
      %p166 = pnand %p164, %p165
      %p167 = pneg %p166
      // Predicated region
      $region9: #{tpu_custom_call.1} parent=5 // pred_check
        _
      $region10: #{tpu_custom_call.1} parent=5 // pred_check_branch
        %169 = sbr.rel (%p166) target = $region12
      $region11: #{tpu_custom_call.1} parent=5 // pred_region
        %s170 = ssub.s32 %s15, 1
        // Predicated region
        $region13: #{tpu_custom_call.1} parent=11 // pred_check
          %p171 = pneg %p62
        $region14: #{tpu_custom_call.1} parent=11 // pred_check_branch
          %173 = sbr.rel (%p171) target = $region16
        $region15: #{tpu_custom_call.1} parent=11 // pred_region
          _
        $region16: #{tpu_custom_call.1} parent=11 // pred_fallthru
          _
        // Predicated region
        $region17: #{tpu_custom_call.1} parent=11 // pred_check
          %p174 = pneg %p83
        $region18: #{tpu_custom_call.1} parent=11 // pred_check_branch
          %176 = sbr.rel (%p174) target = $region20
        $region19: #{tpu_custom_call.1} parent=11 // pred_region
          _
        $region20: #{tpu_custom_call.1} parent=11 // pred_fallthru
          _
        // Predicated region
        $region21: #{tpu_custom_call.1} parent=11 // pred_check
          %p177 = pneg %p104
        $region22: #{tpu_custom_call.1} parent=11 // pred_check_branch
          %179 = sbr.rel (%p177) target = $region24
        $region23: #{tpu_custom_call.1} parent=11 // pred_region
          _
        $region24: #{tpu_custom_call.1} parent=11 // pred_fallthru
          _
      $region12: #{tpu_custom_call.1} parent=5 // pred_fallthru
        _
      %p180 = scmp.lt.s32.totalorder %s15, 2
      // Predicated region
      $region25: #{tpu_custom_call.1} parent=5 // pred_check
        %p181 = pneg %p180
      $region26: #{tpu_custom_call.1} parent=5 // pred_check_branch
        %183 = sbr.rel (%p181) target = $region28
      $region27: #{tpu_custom_call.1} parent=5 // pred_region
        // Predicated region
        $region29: #{tpu_custom_call.1} parent=27 // pred_check
          %p184 = pneg %p35
        $region30: #{tpu_custom_call.1} parent=27 // pred_check_branch
          %186 = sbr.rel (%p184) target = $region32
        $region31: #{tpu_custom_call.1} parent=27 // pred_region
          %p187 = scmp.lt.s32.totalorder %s15, 1
          %s188 = scalar_select %p187, %s15, 1
          %s189 = smul.addr %s188, 16
          %s190 = smul.addr %s189, 8
          %s191 = scalar_lea.vmem %s0, %s190
        $region32: #{tpu_custom_call.1} parent=27 // pred_fallthru
          _
      $region28: #{tpu_custom_call.1} parent=5 // pred_fallthru
        _
      %p192 = scmp.le.s32.totalorder 1, %s15
      %p193 = scmp.lt.s32.totalorder %s15, 3
      %p194 = pnand %p192, %p193
      %p195 = pneg %p194
      // Predicated region
      $region33: #{tpu_custom_call.1} parent=5 // pred_check
        _
      $region34: #{tpu_custom_call.1} parent=5 // pred_check_branch
        %197 = sbr.rel (%p194) target = $region36
      $region35: #{tpu_custom_call.1} parent=5 // pred_region
        %s198 = ssub.s32 %s15, 1
        %p199 = scmp.lt.s32.totalorder %s20, 1
        %s200 = scalar_select %p199, %s20, 1
        %s201 = smul.addr %s200, 16
        %s202 = smul.addr %s201, 8
        %s203 = scalar_lea.vmem %s0, %s202
        %p204 = pneg %p41
        %p205 = pneg %p38
        %p206 = pneg %p62
        %p207 = pneg %p59
        %p208 = pneg %p83
        %p209 = pneg %p80
        %p210 = pneg %p104
        %p211 = pneg %p101
        %p212 = pneg %p130
        %p213 = pneg %p127
        %s214 = sand.u32 %s117, 1
        %s215 = scalar_lea.sflag [#allocation3], %s214
        %s216 = sand.u32 %s117, 1
        %s217 = smul.addr %s216, 8
        %s218 = scalar_lea.vmem [#allocation2], %s217
        %p219 = pneg %p156
        %p220 = pneg %p153
        %p221 = scmp.lt.s32.totalorder %s20, 1
        %s222 = scalar_select %p221, %s20, 1
        %s223 = scalar_lea.vmem %s5, %s222
        %p224 = scmp.lt.s32.totalorder %s20, 1
        %s225 = scalar_select %p224, %s20, 1
        %s226 = smul.addr %s225, 16
        %s227 = smul.addr %s226, 8
        %s228 = scalar_lea.vmem %s0, %s227
        %p229 = scmp.lt.s32.totalorder %s20, 1
        %s230 = scalar_select %p229, %s20, 1
        %s231 = scalar_lea.vmem %s5, %s230
        %v232 = vld [vmem:[%s228] sm:$0xff]
        %v233 = vld [vmem:[%s228 + $0x8] sm:$0xff]
        %v234 = vld [vmem:[%s228 + $0x10] sm:$0xff]
        %v235 = vld [vmem:[%s228 + $0x18] sm:$0xff]
        %v236 = vld [vmem:[%s228 + $0x20] sm:$0xff]
        %v237 = vld [vmem:[%s228 + $0x28] sm:$0xff]
        %v238 = vld [vmem:[%s228 + $0x30] sm:$0xff]
        %v239 = vld [vmem:[%s228 + $0x38] sm:$0xff]
        %v240 = vld [vmem:[%s228 + $0x40] sm:$0xff]
        %v241 = vld [vmem:[%s228 + $0x48] sm:$0xff]
        %v242 = vld [vmem:[%s228 + $0x50] sm:$0xff]
        %v243 = vld [vmem:[%s228 + $0x58] sm:$0xff]
        %v244 = vld [vmem:[%s228 + $0x60] sm:$0xff]
        %v245 = vld [vmem:[%s228 + $0x68] sm:$0xff]
        %v246 = vld [vmem:[%s228 + $0x70] sm:$0xff]
        %v247 = vld [vmem:[%s228 + $0x78] sm:$0xff]
        %v248 = vld [vmem:[%s1] sm:$0xff]
        %v249 = vld [vmem:[%s1 + $0x8] sm:$0xff]
        %v250 = vld [vmem:[%s1 + $0x10] sm:$0xff]
        %v251 = vld [vmem:[%s1 + $0x18] sm:$0xff]
        %v252 = vld [vmem:[%s2] sm:$0x1]
        %v254 = vlaneseq
        %v255 = vshrl.u32 %v254, 7
        %v256 = vsub.s32 0, %v255
        %v257 = vrot.slane %v252, %v256
        %vm259 = vcmask 261120
        %v261 = vsel %vm259, %v232, 0
        %v264 = vsel %vm259, %v233, 0
        %v267 = vsel %vm259, %v234, 0
        %v270 = vsel %vm259, %v235, 0
        %v273 = vsel %vm259, %v236, 0
        %v276 = vsel %vm259, %v237, 0
        %v279 = vsel %vm259, %v238, 0
        %v282 = vsel %vm259, %v239, 0
        %v285 = vsel %vm259, %v240, 0
        %v288 = vsel %vm259, %v241, 0
        %v291 = vsel %vm259, %v242, 0
        %v294 = vsel %vm259, %v243, 0
        %v297 = vsel %vm259, %v244, 0
        %v300 = vsel %vm259, %v245, 0
        %v303 = vsel %vm259, %v246, 0
        %v306 = vsel %vm259, %v247, 0
        %308 = vmatprep.subr.mxu0 0.0
        %309 = vmatpush1.msra.mxu0 %v248
        %310 = vmatprep.subr.mxu0 0.0
        %311 = vmatpush1.msra.mxu0 %v249
        %312 = vmatprep.subr.mxu0 0.0
        %313 = vmatpush1.msra.mxu0 %v250
        %314 = vmatprep.subr.mxu0 0.0
        %315 = vmatpush1.msra.mxu0 %v251
        %316 = vmatprep.subr.mxu0 0.0
        %317 = vmatpush1.msra.mxu0 0.0
        %318 = vmatprep.subr.mxu0 0.0
        %319 = vmatpush1.msra.mxu0 0.0
        %320 = vmatprep.subr.mxu0 0.0
        %321 = vmatpush1.msra.mxu0 0.0
        %322 = vmatprep.subr.mxu0 0.0
        %323 = vmatpush1.msra.mxu0 0.0
        %324 = vmatprep.subr.mxu0 0.0
        %325 = vmatpush1.msra.mxu0 0.0
        %326 = vmatprep.subr.mxu0 0.0
        %327 = vmatpush1.msra.mxu0 0.0
        %328 = vmatprep.subr.mxu0 0.0
        %329 = vmatpush1.msra.mxu0 0.0
        %330 = vmatprep.subr.mxu0 0.0
        %331 = vmatpush1.msra.mxu0 0.0
        %332 = vmatprep.subr.mxu0 0.0
        %333 = vmatpush1.msra.mxu0 0.0
        %334 = vmatprep.subr.mxu0 0.0
        %335 = vmatpush1.msra.mxu0 0.0
        %336 = vmatprep.subr.mxu0 0.0
        %337 = vmatpush1.msra.mxu0 0.0
        %338 = vmatprep.subr.mxu0 0.0
        %339 = vmatpush1.msra.mxu0 0.0
        %340 = vmatprep.subr.mxu0 0.0
        %341 = vmatpush1.msra.mxu0 0.0
        %342 = vmatprep.subr.mxu0 0.0
        %343 = vmatpush1.msra.mxu0 0.0
        %344 = vmatprep.subr.mxu0 0.0
        %345 = vmatpush1.msra.mxu0 0.0
        %346 = vmatprep.subr.mxu0 0.0
        %347 = vmatpush1.msra.mxu0 0.0
        %348 = vmatprep.subr.mxu0 0.0
        %349 = vmatpush1.msra.mxu0 0.0
        %350 = vmatprep.subr.mxu0 0.0
        %351 = vmatpush1.msra.mxu0 0.0
        %352 = vmatprep.subr.mxu0 0.0
        %353 = vmatpush1.msra.mxu0 0.0
        %354 = vmatprep.subr.mxu0 0.0
        %355 = vmatpush1.msra.mxu0 0.0
        %356 = vmatprep.subr.mxu0 0.0
        %357 = vmatpush1.msra.mxu0 0.0
        %358 = vmatprep.subr.mxu0 0.0
        %359 = vmatpush1.msra.mxu0 0.0
        %360 = vmatprep.subr.mxu0 0.0
        %361 = vmatpush1.msra.mxu0 0.0
        %362 = vmatprep.subr.mxu0 0.0
        %363 = vmatpush1.msra.mxu0 0.0
        %364 = vmatprep.subr.mxu0 0.0
        %365 = vmatpush1.msra.mxu0 0.0
        %366 = vmatprep.subr.mxu0 0.0
        %367 = vmatpush1.msra.mxu0 0.0
        %368 = vmatprep.subr.mxu0 0.0
        %369 = vmatpush1.msra.mxu0 0.0
        %370 = vmatprep.subr.mxu0 0.0
        %371 = vmatpush1.msra.mxu0 0.0
        %372 = vmatprep.mubr.f32.mxu0 0.0
        %373 = vmatmul.mubr.f32.gmra.mrb[0].mxu0 %v261
        %v374 = vpop.f32.mrb[0].mxu0
        %v375 = vadd.f32 %v257, %v374
        %v376 = vpop.f32.mrb[0].mxu0
        %377 = vmatprep.mubr.f32.mxu0 0.0
        %378 = vmatmul.mubr.f32.gmra.mrb[0].mxu0 %v264
        %v379 = vpop.f32.mrb[0].mxu0
        %v380 = vadd.f32 %v257, %v379
        %v381 = vpop.f32.mrb[0].mxu0
        %382 = vmatprep.mubr.f32.mxu0 0.0
        %383 = vmatmul.mubr.f32.gmra.mrb[0].mxu0 %v267
        %v384 = vpop.f32.mrb[0].mxu0
        %v385 = vadd.f32 %v257, %v384
        %v386 = vpop.f32.mrb[0].mxu0
        %387 = vmatprep.mubr.f32.mxu0 0.0
        %388 = vmatmul.mubr.f32.gmra.mrb[0].mxu0 %v270
        %v389 = vpop.f32.mrb[0].mxu0
        %v390 = vadd.f32 %v257, %v389
        %v391 = vpop.f32.mrb[0].mxu0
        %392 = vmatprep.mubr.f32.mxu0 0.0
        %393 = vmatmul.mubr.f32.gmra.mrb[0].mxu0 %v273
        %v394 = vpop.f32.mrb[0].mxu0
        %v395 = vadd.f32 %v257, %v394
        %v396 = vpop.f32.mrb[0].mxu0
        %397 = vmatprep.mubr.f32.mxu0 0.0
        %398 = vmatmul.mubr.f32.gmra.mrb[0].mxu0 %v276
        %v399 = vpop.f32.mrb[0].mxu0
        %v400 = vadd.f32 %v257, %v399
        %v401 = vpop.f32.mrb[0].mxu0
        %402 = vmatprep.mubr.f32.mxu0 0.0
        %403 = vmatmul.mubr.f32.gmra.mrb[0].mxu0 %v279
        %v404 = vpop.f32.mrb[0].mxu0
        %v405 = vadd.f32 %v257, %v404
        %v406 = vpop.f32.mrb[0].mxu0
        %407 = vmatprep.mubr.f32.mxu0 0.0
        %408 = vmatmul.mubr.f32.gmra.mrb[0].mxu0 %v282
        %v409 = vpop.f32.mrb[0].mxu0
        %v410 = vadd.f32 %v257, %v409
        %v411 = vpop.f32.mrb[0].mxu0
        %412 = vmatprep.mubr.f32.mxu0 0.0
        %413 = vmatmul.mubr.f32.gmra.mrb[0].mxu0 %v285
        %v414 = vpop.f32.mrb[0].mxu0
        %v415 = vadd.f32 %v257, %v414
        %v416 = vpop.f32.mrb[0].mxu0
        %417 = vmatprep.mubr.f32.mxu0 0.0
        %418 = vmatmul.mubr.f32.gmra.mrb[0].mxu0 %v288
        %v419 = vpop.f32.mrb[0].mxu0
        %v420 = vadd.f32 %v257, %v419
        %v421 = vpop.f32.mrb[0].mxu0
        %422 = vmatprep.mubr.f32.mxu0 0.0
        %423 = vmatmul.mubr.f32.gmra.mrb[0].mxu0 %v291
        %v424 = vpop.f32.mrb[0].mxu0
        %v425 = vadd.f32 %v257, %v424
        %v426 = vpop.f32.mrb[0].mxu0
        %427 = vmatprep.mubr.f32.mxu0 0.0
        %428 = vmatmul.mubr.f32.gmra.mrb[0].mxu0 %v294
        %v429 = vpop.f32.mrb[0].mxu0
        %v430 = vadd.f32 %v257, %v429
        %v431 = vpop.f32.mrb[0].mxu0
        %432 = vmatprep.mubr.f32.mxu0 0.0
        %433 = vmatmul.mubr.f32.gmra.mrb[0].mxu0 %v297
        %v434 = vpop.f32.mrb[0].mxu0
        %v435 = vadd.f32 %v257, %v434
        %v436 = vpop.f32.mrb[0].mxu0
        %437 = vmatprep.mubr.f32.mxu0 0.0
        %438 = vmatmul.mubr.f32.gmra.mrb[0].mxu0 %v300
        %v439 = vpop.f32.mrb[0].mxu0
        %v440 = vadd.f32 %v257, %v439
        %v441 = vpop.f32.mrb[0].mxu0
        %442 = vmatprep.mubr.f32.mxu0 0.0
        %443 = vmatmul.mubr.f32.gmra.mrb[0].mxu0 %v303
        %v444 = vpop.f32.mrb[0].mxu0
        %v445 = vadd.f32 %v257, %v444
        %v446 = vpop.f32.mrb[0].mxu0
        %447 = vmatprep.mubr.f32.mxu0 0.0
        %448 = vmatmul.mubr.f32.gmra.mrb[0].mxu0 %v306
        %v449 = vpop.f32.mrb[0].mxu0
        %v450 = vadd.f32 %v257, %v449
        %v451 = vpop.f32.mrb[0].mxu0
        %452 = vdwg.mxu0
        %v453 = vmax.f32 %v375, 0.0
        %v454 = vmax.f32 %v380, 0.0
        %v455 = vmax.f32 %v385, 0.0
        %v456 = vmax.f32 %v390, 0.0
        %v457 = vmax.f32 %v395, 0.0
        %v458 = vmax.f32 %v400, 0.0
        %v459 = vmax.f32 %v405, 0.0
        %v460 = vmax.f32 %v410, 0.0
        %v461 = vmax.f32 %v415, 0.0
        %v462 = vmax.f32 %v420, 0.0
        %v463 = vmax.f32 %v425, 0.0
        %v464 = vmax.f32 %v430, 0.0
        %v465 = vmax.f32 %v435, 0.0
        %v466 = vmax.f32 %v440, 0.0
        %v467 = vmax.f32 %v445, 0.0
        %v468 = vmax.f32 %v450, 0.0
        %vm469 = vcmask 130048
        %v471 = vsel %vm469, %v453, 0
        %473 = vmatprep.subr.mxu0 0.0
        %474 = vmatpush1.xpose.msra.mxu0 %v471
        %475 = vmatprep.subr.mxu0 0.0
        %476 = vmatpush1.xpose.msra.mxu0 0.0
        %477 = vmatprep.subr.mxu0 0.0
        %478 = vmatpush1.xpose.msra.mxu0 0.0
        %479 = vmatprep.subr.mxu0 0.0
        %480 = vmatpush1.xpose.msra.mxu0 0.0
        %481 = vmatprep.subr.mxu0 0.0
        %482 = vmatpush1.xpose.msra.mxu0 0.0
        %483 = vmatprep.subr.mxu0 0.0
        %484 = vmatpush1.xpose.msra.mxu0 0.0
        %485 = vmatprep.subr.mxu0 0.0
        %486 = vmatpush1.xpose.msra.mxu0 0.0
        %487 = vmatprep.subr.mxu0 0.0
        %488 = vmatpush1.xpose.msra.mxu0 0.0
        %489 = vmatprep.subr.mxu0 0.0
        %490 = vmatpush1.xpose.msra.mxu0 0.0
        %491 = vmatprep.subr.mxu0 0.0
        %492 = vmatpush1.xpose.msra.mxu0 0.0
        %493 = vmatprep.subr.mxu0 0.0
        %494 = vmatpush1.xpose.msra.mxu0 0.0
        %495 = vmatprep.subr.mxu0 0.0
        %496 = vmatpush1.xpose.msra.mxu0 0.0
        %497 = vmatprep.subr.mxu0 0.0
        %498 = vmatpush1.xpose.msra.mxu0 0.0
        %499 = vmatprep.subr.mxu0 0.0
        %500 = vmatpush1.xpose.msra.mxu0 0.0
        %501 = vmatprep.subr.mxu0 0.0
        %502 = vmatpush1.xpose.msra.mxu0 0.0
        %503 = vmatprep.subr.mxu0 0.0
        %504 = vmatpush1.xpose.msra.mxu0 0.0
        %505 = vmatprep.subr.mxu0 0.0
        %506 = vmatpush1.xpose.msra.mxu0 0.0
        %507 = vmatprep.subr.mxu0 0.0
        %508 = vmatpush1.xpose.msra.mxu0 0.0
        %509 = vmatprep.subr.mxu0 0.0
        %510 = vmatpush1.xpose.msra.mxu0 0.0
        %511 = vmatprep.subr.mxu0 0.0
        %512 = vmatpush1.xpose.msra.mxu0 0.0
        %513 = vmatprep.subr.mxu0 0.0
        %514 = vmatpush1.xpose.msra.mxu0 0.0
        %515 = vmatprep.subr.mxu0 0.0
        %516 = vmatpush1.xpose.msra.mxu0 0.0
        %517 = vmatprep.subr.mxu0 0.0
        %518 = vmatpush1.xpose.msra.mxu0 0.0
        %519 = vmatprep.subr.mxu0 0.0
        %520 = vmatpush1.xpose.msra.mxu0 0.0
        %521 = vmatprep.subr.mxu0 0.0
        %522 = vmatpush1.xpose.msra.mxu0 0.0
        %523 = vmatprep.subr.mxu0 0.0
        %524 = vmatpush1.xpose.msra.mxu0 0.0
        %525 = vmatprep.subr.mxu0 0.0
        %526 = vmatpush1.xpose.msra.mxu0 0.0
        %527 = vmatprep.subr.mxu0 0.0
        %528 = vmatpush1.xpose.msra.mxu0 0.0
        %529 = vmatprep.subr.mxu0 0.0
        %530 = vmatpush1.xpose.msra.mxu0 0.0
        %531 = vmatprep.subr.mxu0 0.0
        %532 = vmatpush1.xpose.msra.mxu0 0.0
        %533 = vmatprep.subr.mxu0 0.0
        %534 = vmatpush1.xpose.msra.mxu0 0.0
        %535 = vmatprep.subr.mxu0 0.0
        %536 = vmatpush1.xpose.msra.mxu0 0.0
        %537 = vmatprep.mubr.f32.mxu0 0.0
        %538 = vmatmul.mubr.f32.gmra.mrb[0].mxu0 %v471
        %v539 = vpop.f32.mrb[0].mxu0
        %v540 = vadd.f32 0.0, %v539
        %v541 = vpop.f32.mrb[0].mxu0
        %542 = vdwg.mxu0
        %v544 = vsel %vm469, %v454, 0
        %546 = vmatprep.subr.mxu0 0.0
        %547 = vmatpush1.xpose.msra.mxu0 %v544
        %548 = vmatprep.subr.mxu0 0.0
        %549 = vmatpush1.xpose.msra.mxu0 0.0
        %550 = vmatprep.subr.mxu0 0.0
        %551 = vmatpush1.xpose.msra.mxu0 0.0
        %552 = vmatprep.subr.mxu0 0.0
        %553 = vmatpush1.xpose.msra.mxu0 0.0
        %554 = vmatprep.subr.mxu0 0.0
        %555 = vmatpush1.xpose.msra.mxu0 0.0
        %556 = vmatprep.subr.mxu0 0.0
        %557 = vmatpush1.xpose.msra.mxu0 0.0
        %558 = vmatprep.subr.mxu0 0.0
        %559 = vmatpush1.xpose.msra.mxu0 0.0
        %560 = vmatprep.subr.mxu0 0.0
        %561 = vmatpush1.xpose.msra.mxu0 0.0
        %562 = vmatprep.subr.mxu0 0.0
        %563 = vmatpush1.xpose.msra.mxu0 0.0
        %564 = vmatprep.subr.mxu0 0.0
        %565 = vmatpush1.xpose.msra.mxu0 0.0
        %566 = vmatprep.subr.mxu0 0.0
        %567 = vmatpush1.xpose.msra.mxu0 0.0
        %568 = vmatprep.subr.mxu0 0.0
        %569 = vmatpush1.xpose.msra.mxu0 0.0
        %570 = vmatprep.subr.mxu0 0.0
        %571 = vmatpush1.xpose.msra.mxu0 0.0
        %572 = vmatprep.subr.mxu0 0.0
        %573 = vmatpush1.xpose.msra.mxu0 0.0
        %574 = vmatprep.subr.mxu0 0.0
        %575 = vmatpush1.xpose.msra.mxu0 0.0
        %576 = vmatprep.subr.mxu0 0.0
        %577 = vmatpush1.xpose.msra.mxu0 0.0
        %578 = vmatprep.subr.mxu0 0.0
        %579 = vmatpush1.xpose.msra.mxu0 0.0
        %580 = vmatprep.subr.mxu0 0.0
        %581 = vmatpush1.xpose.msra.mxu0 0.0
        %582 = vmatprep.subr.mxu0 0.0
        %583 = vmatpush1.xpose.msra.mxu0 0.0
        %584 = vmatprep.subr.mxu0 0.0
        %585 = vmatpush1.xpose.msra.mxu0 0.0
        %586 = vmatprep.subr.mxu0 0.0
        %587 = vmatpush1.xpose.msra.mxu0 0.0
        %588 = vmatprep.subr.mxu0 0.0
        %589 = vmatpush1.xpose.msra.mxu0 0.0
        %590 = vmatprep.subr.mxu0 0.0
        %591 = vmatpush1.xpose.msra.mxu0 0.0
        %592 = vmatprep.subr.mxu0 0.0
        %593 = vmatpush1.xpose.msra.mxu0 0.0
        %594 = vmatprep.subr.mxu0 0.0
        %595 = vmatpush1.xpose.msra.mxu0 0.0
        %596 = vmatprep.subr.mxu0 0.0
        %597 = vmatpush1.xpose.msra.mxu0 0.0
        %598 = vmatprep.subr.mxu0 0.0
        %599 = vmatpush1.xpose.msra.mxu0 0.0
        %600 = vmatprep.subr.mxu0 0.0
        %601 = vmatpush1.xpose.msra.mxu0 0.0
        %602 = vmatprep.subr.mxu0 0.0
        %603 = vmatpush1.xpose.msra.mxu0 0.0
        %604 = vmatprep.subr.mxu0 0.0
        %605 = vmatpush1.xpose.msra.mxu0 0.0
        %606 = vmatprep.subr.mxu0 0.0
        %607 = vmatpush1.xpose.msra.mxu0 0.0
        %608 = vmatprep.subr.mxu0 0.0
        %609 = vmatpush1.xpose.msra.mxu0 0.0
        %610 = vmatprep.mubr.f32.mxu0 0.0
        %611 = vmatmul.mubr.f32.gmra.mrb[0].mxu0 %v544
        %v612 = vpop.f32.mrb[0].mxu0
        %v613 = vadd.f32 0.0, %v612
        %v614 = vpop.f32.mrb[0].mxu0
        %615 = vdwg.mxu0
        %v617 = vsel %vm469, %v455, 0
        %619 = vmatprep.subr.mxu0 0.0
        %620 = vmatpush1.xpose.msra.mxu0 %v617
        %621 = vmatprep.subr.mxu0 0.0
        %622 = vmatpush1.xpose.msra.mxu0 0.0
        %623 = vmatprep.subr.mxu0 0.0
        %624 = vmatpush1.xpose.msra.mxu0 0.0
        %625 = vmatprep.subr.mxu0 0.0
        %626 = vmatpush1.xpose.msra.mxu0 0.0
        %627 = vmatprep.subr.mxu0 0.0
        %628 = vmatpush1.xpose.msra.mxu0 0.0
        %629 = vmatprep.subr.mxu0 0.0
        %630 = vmatpush1.xpose.msra.mxu0 0.0
        %631 = vmatprep.subr.mxu0 0.0
        %632 = vmatpush1.xpose.msra.mxu0 0.0
        %633 = vmatprep.subr.mxu0 0.0
        %634 = vmatpush1.xpose.msra.mxu0 0.0
        %635 = vmatprep.subr.mxu0 0.0
        %636 = vmatpush1.xpose.msra.mxu0 0.0
        %637 = vmatprep.subr.mxu0 0.0
        %638 = vmatpush1.xpose.msra.mxu0 0.0
        %639 = vmatprep.subr.mxu0 0.0
        %640 = vmatpush1.xpose.msra.mxu0 0.0
        %641 = vmatprep.subr.mxu0 0.0
        %642 = vmatpush1.xpose.msra.mxu0 0.0
        %643 = vmatprep.subr.mxu0 0.0
        %644 = vmatpush1.xpose.msra.mxu0 0.0
        %645 = vmatprep.subr.mxu0 0.0
        %646 = vmatpush1.xpose.msra.mxu0 0.0
        %647 = vmatprep.subr.mxu0 0.0
        %648 = vmatpush1.xpose.msra.mxu0 0.0
        %649 = vmatprep.subr.mxu0 0.0
        %650 = vmatpush1.xpose.msra.mxu0 0.0
        %651 = vmatprep.subr.mxu0 0.0
        %652 = vmatpush1.xpose.msra.mxu0 0.0
        %653 = vmatprep.subr.mxu0 0.0
        %654 = vmatpush1.xpose.msra.mxu0 0.0
        %655 = vmatprep.subr.mxu0 0.0
        %656 = vmatpush1.xpose.msra.mxu0 0.0
        %657 = vmatprep.subr.mxu0 0.0
        %658 = vmatpush1.xpose.msra.mxu0 0.0
        %659 = vmatprep.subr.mxu0 0.0
        %660 = vmatpush1.xpose.msra.mxu0 0.0
        %661 = vmatprep.subr.mxu0 0.0
        %662 = vmatpush1.xpose.msra.mxu0 0.0
        %663 = vmatprep.subr.mxu0 0.0
        %664 = vmatpush1.xpose.msra.mxu0 0.0
        %665 = vmatprep.subr.mxu0 0.0
        %666 = vmatpush1.xpose.msra.mxu0 0.0
        %667 = vmatprep.subr.mxu0 0.0
        %668 = vmatpush1.xpose.msra.mxu0 0.0
        %669 = vmatprep.subr.mxu0 0.0
        %670 = vmatpush1.xpose.msra.mxu0 0.0
        %671 = vmatprep.subr.mxu0 0.0
        %672 = vmatpush1.xpose.msra.mxu0 0.0
        %673 = vmatprep.subr.mxu0 0.0
        %674 = vmatpush1.xpose.msra.mxu0 0.0
        %675 = vmatprep.subr.mxu0 0.0
        %676 = vmatpush1.xpose.msra.mxu0 0.0
        %677 = vmatprep.subr.mxu0 0.0
        %678 = vmatpush1.xpose.msra.mxu0 0.0
        %679 = vmatprep.subr.mxu0 0.0
        %680 = vmatpush1.xpose.msra.mxu0 0.0
        %681 = vmatprep.subr.mxu0 0.0
        %682 = vmatpush1.xpose.msra.mxu0 0.0
        %683 = vmatprep.mubr.f32.mxu0 0.0
        %684 = vmatmul.mubr.f32.gmra.mrb[0].mxu0 %v617
        %v685 = vpop.f32.mrb[0].mxu0
        %v686 = vadd.f32 0.0, %v685
        %v687 = vpop.f32.mrb[0].mxu0
        %688 = vdwg.mxu0
        %v690 = vsel %vm469, %v456, 0
        %692 = vmatprep.subr.mxu0 0.0
        %693 = vmatpush1.xpose.msra.mxu0 %v690
        %694 = vmatprep.subr.mxu0 0.0
        %695 = vmatpush1.xpose.msra.mxu0 0.0
        %696 = vmatprep.subr.mxu0 0.0
        %697 = vmatpush1.xpose.msra.mxu0 0.0
        %698 = vmatprep.subr.mxu0 0.0
        %699 = vmatpush1.xpose.msra.mxu0 0.0
        %700 = vmatprep.subr.mxu0 0.0
        %701 = vmatpush1.xpose.msra.mxu0 0.0
        %702 = vmatprep.subr.mxu0 0.0
        %703 = vmatpush1.xpose.msra.mxu0 0.0
        %704 = vmatprep.subr.mxu0 0.0
        %705 = vmatpush1.xpose.msra.mxu0 0.0
        %706 = vmatprep.subr.mxu0 0.0
        %707 = vmatpush1.xpose.msra.mxu0 0.0
        %708 = vmatprep.subr.mxu0 0.0
        %709 = vmatpush1.xpose.msra.mxu0 0.0
        %710 = vmatprep.subr.mxu0 0.0
        %711 = vmatpush1.xpose.msra.mxu0 0.0
        %712 = vmatprep.subr.mxu0 0.0
        %713 = vmatpush1.xpose.msra.mxu0 0.0
        %714 = vmatprep.subr.mxu0 0.0
        %715 = vmatpush1.xpose.msra.mxu0 0.0
        %716 = vmatprep.subr.mxu0 0.0
        %717 = vmatpush1.xpose.msra.mxu0 0.0
        %718 = vmatprep.subr.mxu0 0.0
        %719 = vmatpush1.xpose.msra.mxu0 0.0
        %720 = vmatprep.subr.mxu0 0.0
        %721 = vmatpush1.xpose.msra.mxu0 0.0
        %722 = vmatprep.subr.mxu0 0.0
        %723 = vmatpush1.xpose.msra.mxu0 0.0
        %724 = vmatprep.subr.mxu0 0.0
        %725 = vmatpush1.xpose.msra.mxu0 0.0
        %726 = vmatprep.subr.mxu0 0.0
        %727 = vmatpush1.xpose.msra.mxu0 0.0
        %728 = vmatprep.subr.mxu0 0.0
        %729 = vmatpush1.xpose.msra.mxu0 0.0
        %730 = vmatprep.subr.mxu0 0.0
        %731 = vmatpush1.xpose.msra.mxu0 0.0
        %732 = vmatprep.subr.mxu0 0.0
        %733 = vmatpush1.xpose.msra.mxu0 0.0
        %734 = vmatprep.subr.mxu0 0.0
        %735 = vmatpush1.xpose.msra.mxu0 0.0
        %736 = vmatprep.subr.mxu0 0.0
        %737 = vmatpush1.xpose.msra.mxu0 0.0
        %738 = vmatprep.subr.mxu0 0.0
        %739 = vmatpush1.xpose.msra.mxu0 0.0
        %740 = vmatprep.subr.mxu0 0.0
        %741 = vmatpush1.xpose.msra.mxu0 0.0
        %742 = vmatprep.subr.mxu0 0.0
        %743 = vmatpush1.xpose.msra.mxu0 0.0
        %744 = vmatprep.subr.mxu0 0.0
        %745 = vmatpush1.xpose.msra.mxu0 0.0
        %746 = vmatprep.subr.mxu0 0.0
        %747 = vmatpush1.xpose.msra.mxu0 0.0
        %748 = vmatprep.subr.mxu0 0.0
        %749 = vmatpush1.xpose.msra.mxu0 0.0
        %750 = vmatprep.subr.mxu0 0.0
        %751 = vmatpush1.xpose.msra.mxu0 0.0
        %752 = vmatprep.subr.mxu0 0.0
        %753 = vmatpush1.xpose.msra.mxu0 0.0
        %754 = vmatprep.subr.mxu0 0.0
        %755 = vmatpush1.xpose.msra.mxu0 0.0
        %756 = vmatprep.mubr.f32.mxu0 0.0
        %757 = vmatmul.mubr.f32.gmra.mrb[0].mxu0 %v690
        %v758 = vpop.f32.mrb[0].mxu0
        %v759 = vadd.f32 0.0, %v758
        %v760 = vpop.f32.mrb[0].mxu0
        %761 = vdwg.mxu0
        %v763 = vsel %vm469, %v457, 0
        %765 = vmatprep.subr.mxu0 0.0
        %766 = vmatpush1.xpose.msra.mxu0 %v763
        %767 = vmatprep.subr.mxu0 0.0
        %768 = vmatpush1.xpose.msra.mxu0 0.0
        %769 = vmatprep.subr.mxu0 0.0
        %770 = vmatpush1.xpose.msra.mxu0 0.0
        %771 = vmatprep.subr.mxu0 0.0
        %772 = vmatpush1.xpose.msra.mxu0 0.0
        %773 = vmatprep.subr.mxu0 0.0
        %774 = vmatpush1.xpose.msra.mxu0 0.0
        %775 = vmatprep.subr.mxu0 0.0
        %776 = vmatpush1.xpose.msra.mxu0 0.0
        %777 = vmatprep.subr.mxu0 0.0
        %778 = vmatpush1.xpose.msra.mxu0 0.0
        %779 = vmatprep.subr.mxu0 0.0
        %780 = vmatpush1.xpose.msra.mxu0 0.0
        %781 = vmatprep.subr.mxu0 0.0
        %782 = vmatpush1.xpose.msra.mxu0 0.0
        %783 = vmatprep.subr.mxu0 0.0
        %784 = vmatpush1.xpose.msra.mxu0 0.0
        %785 = vmatprep.subr.mxu0 0.0
        %786 = vmatpush1.xpose.msra.mxu0 0.0
        %787 = vmatprep.subr.mxu0 0.0
        %788 = vmatpush1.xpose.msra.mxu0 0.0
        %789 = vmatprep.subr.mxu0 0.0
        %790 = vmatpush1.xpose.msra.mxu0 0.0
        %791 = vmatprep.subr.mxu0 0.0
        %792 = vmatpush1.xpose.msra.mxu0 0.0
        %793 = vmatprep.subr.mxu0 0.0
        %794 = vmatpush1.xpose.msra.mxu0 0.0
        %795 = vmatprep.subr.mxu0 0.0
        %796 = vmatpush1.xpose.msra.mxu0 0.0
        %797 = vmatprep.subr.mxu0 0.0
        %798 = vmatpush1.xpose.msra.mxu0 0.0
        %799 = vmatprep.subr.mxu0 0.0
        %800 = vmatpush1.xpose.msra.mxu0 0.0
        %801 = vmatprep.subr.mxu0 0.0
        %802 = vmatpush1.xpose.msra.mxu0 0.0
        %803 = vmatprep.subr.mxu0 0.0
        %804 = vmatpush1.xpose.msra.mxu0 0.0
        %805 = vmatprep.subr.mxu0 0.0
        %806 = vmatpush1.xpose.msra.mxu0 0.0
        %807 = vmatprep.subr.mxu0 0.0
        %808 = vmatpush1.xpose.msra.mxu0 0.0
        %809 = vmatprep.subr.mxu0 0.0
        %810 = vmatpush1.xpose.msra.mxu0 0.0
        %811 = vmatprep.subr.mxu0 0.0
        %812 = vmatpush1.xpose.msra.mxu0 0.0
        %813 = vmatprep.subr.mxu0 0.0
        %814 = vmatpush1.xpose.msra.mxu0 0.0
        %815 = vmatprep.subr.mxu0 0.0
        %816 = vmatpush1.xpose.msra.mxu0 0.0
        %817 = vmatprep.subr.mxu0 0.0
        %818 = vmatpush1.xpose.msra.mxu0 0.0
        %819 = vmatprep.subr.mxu0 0.0
        %820 = vmatpush1.xpose.msra.mxu0 0.0
        %821 = vmatprep.subr.mxu0 0.0
        %822 = vmatpush1.xpose.msra.mxu0 0.0
        %823 = vmatprep.subr.mxu0 0.0
        %824 = vmatpush1.xpose.msra.mxu0 0.0
        %825 = vmatprep.subr.mxu0 0.0
        %826 = vmatpush1.xpose.msra.mxu0 0.0
        %827 = vmatprep.subr.mxu0 0.0
        %828 = vmatpush1.xpose.msra.mxu0 0.0
        %829 = vmatprep.mubr.f32.mxu0 0.0
        %830 = vmatmul.mubr.f32.gmra.mrb[0].mxu0 %v763
        %v831 = vpop.f32.mrb[0].mxu0
        %v832 = vadd.f32 0.0, %v831
        %v833 = vpop.f32.mrb[0].mxu0
        %834 = vdwg.mxu0
        %v836 = vsel %vm469, %v458, 0
        %838 = vmatprep.subr.mxu0 0.0
        %839 = vmatpush1.xpose.msra.mxu0 %v836
        %840 = vmatprep.subr.mxu0 0.0
        %841 = vmatpush1.xpose.msra.mxu0 0.0
        %842 = vmatprep.subr.mxu0 0.0
        %843 = vmatpush1.xpose.msra.mxu0 0.0
        %844 = vmatprep.subr.mxu0 0.0
        %845 = vmatpush1.xpose.msra.mxu0 0.0
        %846 = vmatprep.subr.mxu0 0.0
        %847 = vmatpush1.xpose.msra.mxu0 0.0
        %848 = vmatprep.subr.mxu0 0.0
        %849 = vmatpush1.xpose.msra.mxu0 0.0
        %850 = vmatprep.subr.mxu0 0.0
        %851 = vmatpush1.xpose.msra.mxu0 0.0
        %852 = vmatprep.subr.mxu0 0.0
        %853 = vmatpush1.xpose.msra.mxu0 0.0
        %854 = vmatprep.subr.mxu0 0.0
        %855 = vmatpush1.xpose.msra.mxu0 0.0
        %856 = vmatprep.subr.mxu0 0.0
        %857 = vmatpush1.xpose.msra.mxu0 0.0
        %858 = vmatprep.subr.mxu0 0.0
        %859 = vmatpush1.xpose.msra.mxu0 0.0
        %860 = vmatprep.subr.mxu0 0.0
        %861 = vmatpush1.xpose.msra.mxu0 0.0
        %862 = vmatprep.subr.mxu0 0.0
        %863 = vmatpush1.xpose.msra.mxu0 0.0
        %864 = vmatprep.subr.mxu0 0.0
        %865 = vmatpush1.xpose.msra.mxu0 0.0
        %866 = vmatprep.subr.mxu0 0.0
        %867 = vmatpush1.xpose.msra.mxu0 0.0
        %868 = vmatprep.subr.mxu0 0.0
        %869 = vmatpush1.xpose.msra.mxu0 0.0
        %870 = vmatprep.subr.mxu0 0.0
        %871 = vmatpush1.xpose.msra.mxu0 0.0
        %872 = vmatprep.subr.mxu0 0.0
        %873 = vmatpush1.xpose.msra.mxu0 0.0
        %874 = vmatprep.subr.mxu0 0.0
        %875 = vmatpush1.xpose.msra.mxu0 0.0
        %876 = vmatprep.subr.mxu0 0.0
        %877 = vmatpush1.xpose.msra.mxu0 0.0
        %878 = vmatprep.subr.mxu0 0.0
        %879 = vmatpush1.xpose.msra.mxu0 0.0
        %880 = vmatprep.subr.mxu0 0.0
        %881 = vmatpush1.xpose.msra.mxu0 0.0
        %882 = vmatprep.subr.mxu0 0.0
        %883 = vmatpush1.xpose.msra.mxu0 0.0
        %884 = vmatprep.subr.mxu0 0.0
        %885 = vmatpush1.xpose.msra.mxu0 0.0
        %886 = vmatprep.subr.mxu0 0.0
        %887 = vmatpush1.xpose.msra.mxu0 0.0
        %888 = vmatprep.subr.mxu0 0.0
        %889 = vmatpush1.xpose.msra.mxu0 0.0
        %890 = vmatprep.subr.mxu0 0.0
        %891 = vmatpush1.xpose.msra.mxu0 0.0
        %892 = vmatprep.subr.mxu0 0.0
        %893 = vmatpush1.xpose.msra.mxu0 0.0
        %894 = vmatprep.subr.mxu0 0.0
        %895 = vmatpush1.xpose.msra.mxu0 0.0
        %896 = vmatprep.subr.mxu0 0.0
        %897 = vmatpush1.xpose.msra.mxu0 0.0
        %898 = vmatprep.subr.mxu0 0.0
        %899 = vmatpush1.xpose.msra.mxu0 0.0
        %900 = vmatprep.subr.mxu0 0.0
        %901 = vmatpush1.xpose.msra.mxu0 0.0
        %902 = vmatprep.mubr.f32.mxu0 0.0
        %903 = vmatmul.mubr.f32.gmra.mrb[0].mxu0 %v836
        %v904 = vpop.f32.mrb[0].mxu0
        %v905 = vadd.f32 0.0, %v904
        %v906 = vpop.f32.mrb[0].mxu0
        %907 = vdwg.mxu0
        %v909 = vsel %vm469, %v459, 0
        %911 = vmatprep.subr.mxu0 0.0
        %912 = vmatpush1.xpose.msra.mxu0 %v909
        %913 = vmatprep.subr.mxu0 0.0
        %914 = vmatpush1.xpose.msra.mxu0 0.0
        %915 = vmatprep.subr.mxu0 0.0
        %916 = vmatpush1.xpose.msra.mxu0 0.0
        %917 = vmatprep.subr.mxu0 0.0
        %918 = vmatpush1.xpose.msra.mxu0 0.0
        %919 = vmatprep.subr.mxu0 0.0
        %920 = vmatpush1.xpose.msra.mxu0 0.0
        %921 = vmatprep.subr.mxu0 0.0
        %922 = vmatpush1.xpose.msra.mxu0 0.0
        %923 = vmatprep.subr.mxu0 0.0
        %924 = vmatpush1.xpose.msra.mxu0 0.0
        %925 = vmatprep.subr.mxu0 0.0
        %926 = vmatpush1.xpose.msra.mxu0 0.0
        %927 = vmatprep.subr.mxu0 0.0
        %928 = vmatpush1.xpose.msra.mxu0 0.0
        %929 = vmatprep.subr.mxu0 0.0
        %930 = vmatpush1.xpose.msra.mxu0 0.0
        %931 = vmatprep.subr.mxu0 0.0
        %932 = vmatpush1.xpose.msra.mxu0 0.0
        %933 = vmatprep.subr.mxu0 0.0
        %934 = vmatpush1.xpose.msra.mxu0 0.0
        %935 = vmatprep.subr.mxu0 0.0
        %936 = vmatpush1.xpose.msra.mxu0 0.0
        %937 = vmatprep.subr.mxu0 0.0
        %938 = vmatpush1.xpose.msra.mxu0 0.0
        %939 = vmatprep.subr.mxu0 0.0
        %940 = vmatpush1.xpose.msra.mxu0 0.0
        %941 = vmatprep.subr.mxu0 0.0
        %942 = vmatpush1.xpose.msra.mxu0 0.0
        %943 = vmatprep.subr.mxu0 0.0
        %944 = vmatpush1.xpose.msra.mxu0 0.0
        %945 = vmatprep.subr.mxu0 0.0
        %946 = vmatpush1.xpose.msra.mxu0 0.0
        %947 = vmatprep.subr.mxu0 0.0
        %948 = vmatpush1.xpose.msra.mxu0 0.0
        %949 = vmatprep.subr.mxu0 0.0
        %950 = vmatpush1.xpose.msra.mxu0 0.0
        %951 = vmatprep.subr.mxu0 0.0
        %952 = vmatpush1.xpose.msra.mxu0 0.0
        %953 = vmatprep.subr.mxu0 0.0
        %954 = vmatpush1.xpose.msra.mxu0 0.0
        %955 = vmatprep.subr.mxu0 0.0
        %956 = vmatpush1.xpose.msra.mxu0 0.0
        %957 = vmatprep.subr.mxu0 0.0
        %958 = vmatpush1.xpose.msra.mxu0 0.0
        %959 = vmatprep.subr.mxu0 0.0
        %960 = vmatpush1.xpose.msra.mxu0 0.0
        %961 = vmatprep.subr.mxu0 0.0
        %962 = vmatpush1.xpose.msra.mxu0 0.0
        %963 = vmatprep.subr.mxu0 0.0
        %964 = vmatpush1.xpose.msra.mxu0 0.0
        %965 = vmatprep.subr.mxu0 0.0
        %966 = vmatpush1.xpose.msra.mxu0 0.0
        %967 = vmatprep.subr.mxu0 0.0
        %968 = vmatpush1.xpose.msra.mxu0 0.0
        %969 = vmatprep.subr.mxu0 0.0
        %970 = vmatpush1.xpose.msra.mxu0 0.0
        %971 = vmatprep.subr.mxu0 0.0
        %972 = vmatpush1.xpose.msra.mxu0 0.0
        %973 = vmatprep.subr.mxu0 0.0
        %974 = vmatpush1.xpose.msra.mxu0 0.0
        %975 = vmatprep.mubr.f32.mxu0 0.0
        %976 = vmatmul.mubr.f32.gmra.mrb[0].mxu0 %v909
        %v977 = vpop.f32.mrb[0].mxu0
        %v978 = vadd.f32 0.0, %v977
        %v979 = vpop.f32.mrb[0].mxu0
        %980 = vdwg.mxu0
        %v982 = vsel %vm469, %v460, 0
        %984 = vmatprep.subr.mxu0 0.0
        %985 = vmatpush1.xpose.msra.mxu0 %v982
        %986 = vmatprep.subr.mxu0 0.0
        %987 = vmatpush1.xpose.msra.mxu0 0.0
        %988 = vmatprep.subr.mxu0 0.0
        %989 = vmatpush1.xpose.msra.mxu0 0.0
        %990 = vmatprep.subr.mxu0 0.0
        %991 = vmatpush1.xpose.msra.mxu0 0.0
        %992 = vmatprep.subr.mxu0 0.0
        %993 = vmatpush1.xpose.msra.mxu0 0.0
        %994 = vmatprep.subr.mxu0 0.0
        %995 = vmatpush1.xpose.msra.mxu0 0.0
        %996 = vmatprep.subr.mxu0 0.0
        %997 = vmatpush1.xpose.msra.mxu0 0.0
        %998 = vmatprep.subr.mxu0 0.0
        %999 = vmatpush1.xpose.msra.mxu0 0.0
        %1000 = vmatprep.subr.mxu0 0.0
        %1001 = vmatpush1.xpose.msra.mxu0 0.0
        %1002 = vmatprep.subr.mxu0 0.0
        %1003 = vmatpush1.xpose.msra.mxu0 0.0
        %1004 = vmatprep.subr.mxu0 0.0
        %1005 = vmatpush1.xpose.msra.mxu0 0.0
        %1006 = vmatprep.subr.mxu0 0.0
        %1007 = vmatpush1.xpose.msra.mxu0 0.0
        %1008 = vmatprep.subr.mxu0 0.0
        %1009 = vmatpush1.xpose.msra.mxu0 0.0
        %1010 = vmatprep.subr.mxu0 0.0
        %1011 = vmatpush1.xpose.msra.mxu0 0.0
        %1012 = vmatprep.subr.mxu0 0.0
        %1013 = vmatpush1.xpose.msra.mxu0 0.0
        %1014 = vmatprep.subr.mxu0 0.0
        %1015 = vmatpush1.xpose.msra.mxu0 0.0
        %1016 = vmatprep.subr.mxu0 0.0
        %1017 = vmatpush1.xpose.msra.mxu0 0.0
        %1018 = vmatprep.subr.mxu0 0.0
        %1019 = vmatpush1.xpose.msra.mxu0 0.0
        %1020 = vmatprep.subr.mxu0 0.0
        %1021 = vmatpush1.xpose.msra.mxu0 0.0
        %1022 = vmatprep.subr.mxu0 0.0
        %1023 = vmatpush1.xpose.msra.mxu0 0.0
        %1024 = vmatprep.subr.mxu0 0.0
        %1025 = vmatpush1.xpose.msra.mxu0 0.0
        %1026 = vmatprep.subr.mxu0 0.0
        %1027 = vmatpush1.xpose.msra.mxu0 0.0
        %1028 = vmatprep.subr.mxu0 0.0
        %1029 = vmatpush1.xpose.msra.mxu0 0.0
        %1030 = vmatprep.subr.mxu0 0.0
        %1031 = vmatpush1.xpose.msra.mxu0 0.0
        %1032 = vmatprep.subr.mxu0 0.0
        %1033 = vmatpush1.xpose.msra.mxu0 0.0
        %1034 = vmatprep.subr.mxu0 0.0
        %1035 = vmatpush1.xpose.msra.mxu0 0.0
        %1036 = vmatprep.subr.mxu0 0.0
        %1037 = vmatpush1.xpose.msra.mxu0 0.0
        %1038 = vmatprep.subr.mxu0 0.0
        %1039 = vmatpush1.xpose.msra.mxu0 0.0
        %1040 = vmatprep.subr.mxu0 0.0
        %1041 = vmatpush1.xpose.msra.mxu0 0.0
        %1042 = vmatprep.subr.mxu0 0.0
        %1043 = vmatpush1.xpose.msra.mxu0 0.0
        %1044 = vmatprep.subr.mxu0 0.0
        %1045 = vmatpush1.xpose.msra.mxu0 0.0
        %1046 = vmatprep.subr.mxu0 0.0
        %1047 = vmatpush1.xpose.msra.mxu0 0.0
        %1048 = vmatprep.mubr.f32.mxu0 0.0
        %1049 = vmatmul.mubr.f32.gmra.mrb[0].mxu0 %v982
        %v1050 = vpop.f32.mrb[0].mxu0
        %v1051 = vadd.f32 0.0, %v1050
        %v1052 = vpop.f32.mrb[0].mxu0
        %1053 = vdwg.mxu0
        %v1055 = vsel %vm469, %v461, 0
        %1057 = vmatprep.subr.mxu0 0.0
        %1058 = vmatpush1.xpose.msra.mxu0 %v1055
        %1059 = vmatprep.subr.mxu0 0.0
        %1060 = vmatpush1.xpose.msra.mxu0 0.0
        %1061 = vmatprep.subr.mxu0 0.0
        %1062 = vmatpush1.xpose.msra.mxu0 0.0
        %1063 = vmatprep.subr.mxu0 0.0
        %1064 = vmatpush1.xpose.msra.mxu0 0.0
        %1065 = vmatprep.subr.mxu0 0.0
        %1066 = vmatpush1.xpose.msra.mxu0 0.0
        %1067 = vmatprep.subr.mxu0 0.0
        %1068 = vmatpush1.xpose.msra.mxu0 0.0
        %1069 = vmatprep.subr.mxu0 0.0
        %1070 = vmatpush1.xpose.msra.mxu0 0.0
        %1071 = vmatprep.subr.mxu0 0.0
        %1072 = vmatpush1.xpose.msra.mxu0 0.0
        %1073 = vmatprep.subr.mxu0 0.0
        %1074 = vmatpush1.xpose.msra.mxu0 0.0
        %1075 = vmatprep.subr.mxu0 0.0
        %1076 = vmatpush1.xpose.msra.mxu0 0.0
        %1077 = vmatprep.subr.mxu0 0.0
        %1078 = vmatpush1.xpose.msra.mxu0 0.0
        %1079 = vmatprep.subr.mxu0 0.0
        %1080 = vmatpush1.xpose.msra.mxu0 0.0
        %1081 = vmatprep.subr.mxu0 0.0
        %1082 = vmatpush1.xpose.msra.mxu0 0.0
        %1083 = vmatprep.subr.mxu0 0.0
        %1084 = vmatpush1.xpose.msra.mxu0 0.0
        %1085 = vmatprep.subr.mxu0 0.0
        %1086 = vmatpush1.xpose.msra.mxu0 0.0
        %1087 = vmatprep.subr.mxu0 0.0
        %1088 = vmatpush1.xpose.msra.mxu0 0.0
        %1089 = vmatprep.subr.mxu0 0.0
        %1090 = vmatpush1.xpose.msra.mxu0 0.0
        %1091 = vmatprep.subr.mxu0 0.0
        %1092 = vmatpush1.xpose.msra.mxu0 0.0
        %1093 = vmatprep.subr.mxu0 0.0
        %1094 = vmatpush1.xpose.msra.mxu0 0.0
        %1095 = vmatprep.subr.mxu0 0.0
        %1096 = vmatpush1.xpose.msra.mxu0 0.0
        %1097 = vmatprep.subr.mxu0 0.0
        %1098 = vmatpush1.xpose.msra.mxu0 0.0
        %1099 = vmatprep.subr.mxu0 0.0
        %1100 = vmatpush1.xpose.msra.mxu0 0.0
        %1101 = vmatprep.subr.mxu0 0.0
        %1102 = vmatpush1.xpose.msra.mxu0 0.0
        %1103 = vmatprep.subr.mxu0 0.0
        %1104 = vmatpush1.xpose.msra.mxu0 0.0
        %1105 = vmatprep.subr.mxu0 0.0
        %1106 = vmatpush1.xpose.msra.mxu0 0.0
        %1107 = vmatprep.subr.mxu0 0.0
        %1108 = vmatpush1.xpose.msra.mxu0 0.0
        %1109 = vmatprep.subr.mxu0 0.0
        %1110 = vmatpush1.xpose.msra.mxu0 0.0
        %1111 = vmatprep.subr.mxu0 0.0
        %1112 = vmatpush1.xpose.msra.mxu0 0.0
        %1113 = vmatprep.subr.mxu0 0.0
        %1114 = vmatpush1.xpose.msra.mxu0 0.0
        %1115 = vmatprep.subr.mxu0 0.0
        %1116 = vmatpush1.xpose.msra.mxu0 0.0
        %1117 = vmatprep.subr.mxu0 0.0
        %1118 = vmatpush1.xpose.msra.mxu0 0.0
        %1119 = vmatprep.subr.mxu0 0.0
        %1120 = vmatpush1.xpose.msra.mxu0 0.0
        %1121 = vmatprep.mubr.f32.mxu0 0.0
        %1122 = vmatmul.mubr.f32.gmra.mrb[0].mxu0 %v1055
        %v1123 = vpop.f32.mrb[0].mxu0
        %v1124 = vadd.f32 0.0, %v1123
        %v1125 = vpop.f32.mrb[0].mxu0
        %1126 = vdwg.mxu0
        %v1128 = vsel %vm469, %v462, 0
        %1130 = vmatprep.subr.mxu0 0.0
        %1131 = vmatpush1.xpose.msra.mxu0 %v1128
        %1132 = vmatprep.subr.mxu0 0.0
        %1133 = vmatpush1.xpose.msra.mxu0 0.0
        %1134 = vmatprep.subr.mxu0 0.0
        %1135 = vmatpush1.xpose.msra.mxu0 0.0
        %1136 = vmatprep.subr.mxu0 0.0
        %1137 = vmatpush1.xpose.msra.mxu0 0.0
        %1138 = vmatprep.subr.mxu0 0.0
        %1139 = vmatpush1.xpose.msra.mxu0 0.0
        %1140 = vmatprep.subr.mxu0 0.0
        %1141 = vmatpush1.xpose.msra.mxu0 0.0
        %1142 = vmatprep.subr.mxu0 0.0
        %1143 = vmatpush1.xpose.msra.mxu0 0.0
        %1144 = vmatprep.subr.mxu0 0.0
        %1145 = vmatpush1.xpose.msra.mxu0 0.0
        %1146 = vmatprep.subr.mxu0 0.0
        %1147 = vmatpush1.xpose.msra.mxu0 0.0
        %1148 = vmatprep.subr.mxu0 0.0
        %1149 = vmatpush1.xpose.msra.mxu0 0.0
        %1150 = vmatprep.subr.mxu0 0.0
        %1151 = vmatpush1.xpose.msra.mxu0 0.0
        %1152 = vmatprep.subr.mxu0 0.0
        %1153 = vmatpush1.xpose.msra.mxu0 0.0
        %1154 = vmatprep.subr.mxu0 0.0
        %1155 = vmatpush1.xpose.msra.mxu0 0.0
        %1156 = vmatprep.subr.mxu0 0.0
        %1157 = vmatpush1.xpose.msra.mxu0 0.0
        %1158 = vmatprep.subr.mxu0 0.0
        %1159 = vmatpush1.xpose.msra.mxu0 0.0
        %1160 = vmatprep.subr.mxu0 0.0
        %1161 = vmatpush1.xpose.msra.mxu0 0.0
        %1162 = vmatprep.subr.mxu0 0.0
        %1163 = vmatpush1.xpose.msra.mxu0 0.0
        %1164 = vmatprep.subr.mxu0 0.0
        %1165 = vmatpush1.xpose.msra.mxu0 0.0
        %1166 = vmatprep.subr.mxu0 0.0
        %1167 = vmatpush1.xpose.msra.mxu0 0.0
        %1168 = vmatprep.subr.mxu0 0.0
        %1169 = vmatpush1.xpose.msra.mxu0 0.0
        %1170 = vmatprep.subr.mxu0 0.0
        %1171 = vmatpush1.xpose.msra.mxu0 0.0
        %1172 = vmatprep.subr.mxu0 0.0
        %1173 = vmatpush1.xpose.msra.mxu0 0.0
        %1174 = vmatprep.subr.mxu0 0.0
        %1175 = vmatpush1.xpose.msra.mxu0 0.0
        %1176 = vmatprep.subr.mxu0 0.0
        %1177 = vmatpush1.xpose.msra.mxu0 0.0
        %1178 = vmatprep.subr.mxu0 0.0
        %1179 = vmatpush1.xpose.msra.mxu0 0.0
        %1180 = vmatprep.subr.mxu0 0.0
        %1181 = vmatpush1.xpose.msra.mxu0 0.0
        %1182 = vmatprep.subr.mxu0 0.0
        %1183 = vmatpush1.xpose.msra.mxu0 0.0
        %1184 = vmatprep.subr.mxu0 0.0
        %1185 = vmatpush1.xpose.msra.mxu0 0.0
        %1186 = vmatprep.subr.mxu0 0.0
        %1187 = vmatpush1.xpose.msra.mxu0 0.0
        %1188 = vmatprep.subr.mxu0 0.0
        %1189 = vmatpush1.xpose.msra.mxu0 0.0
        %1190 = vmatprep.subr.mxu0 0.0
        %1191 = vmatpush1.xpose.msra.mxu0 0.0
        %1192 = vmatprep.subr.mxu0 0.0
        %1193 = vmatpush1.xpose.msra.mxu0 0.0
        %1194 = vmatprep.mubr.f32.mxu0 0.0
        %1195 = vmatmul.mubr.f32.gmra.mrb[0].mxu0 %v1128
        %v1196 = vpop.f32.mrb[0].mxu0
        %v1197 = vadd.f32 0.0, %v1196
        %v1198 = vpop.f32.mrb[0].mxu0
        %1199 = vdwg.mxu0
        %v1201 = vsel %vm469, %v463, 0
        %1203 = vmatprep.subr.mxu0 0.0
        %1204 = vmatpush1.xpose.msra.mxu0 %v1201
        %1205 = vmatprep.subr.mxu0 0.0
        %1206 = vmatpush1.xpose.msra.mxu0 0.0
        %1207 = vmatprep.subr.mxu0 0.0
        %1208 = vmatpush1.xpose.msra.mxu0 0.0
        %1209 = vmatprep.subr.mxu0 0.0
        %1210 = vmatpush1.xpose.msra.mxu0 0.0
        %1211 = vmatprep.subr.mxu0 0.0
        %1212 = vmatpush1.xpose.msra.mxu0 0.0
        %1213 = vmatprep.subr.mxu0 0.0
        %1214 = vmatpush1.xpose.msra.mxu0 0.0
        %1215 = vmatprep.subr.mxu0 0.0
        %1216 = vmatpush1.xpose.msra.mxu0 0.0
        %1217 = vmatprep.subr.mxu0 0.0
        %1218 = vmatpush1.xpose.msra.mxu0 0.0
        %1219 = vmatprep.subr.mxu0 0.0
        %1220 = vmatpush1.xpose.msra.mxu0 0.0
        %1221 = vmatprep.subr.mxu0 0.0
        %1222 = vmatpush1.xpose.msra.mxu0 0.0
        %1223 = vmatprep.subr.mxu0 0.0
        %1224 = vmatpush1.xpose.msra.mxu0 0.0
        %1225 = vmatprep.subr.mxu0 0.0
        %1226 = vmatpush1.xpose.msra.mxu0 0.0
        %1227 = vmatprep.subr.mxu0 0.0
        %1228 = vmatpush1.xpose.msra.mxu0 0.0
        %1229 = vmatprep.subr.mxu0 0.0
        %1230 = vmatpush1.xpose.msra.mxu0 0.0
        %1231 = vmatprep.subr.mxu0 0.0
        %1232 = vmatpush1.xpose.msra.mxu0 0.0
        %1233 = vmatprep.subr.mxu0 0.0
        %1234 = vmatpush1.xpose.msra.mxu0 0.0
        %1235 = vmatprep.subr.mxu0 0.0
        %1236 = vmatpush1.xpose.msra.mxu0 0.0
        %1237 = vmatprep.subr.mxu0 0.0
        %1238 = vmatpush1.xpose.msra.mxu0 0.0
        %1239 = vmatprep.subr.mxu0 0.0
        %1240 = vmatpush1.xpose.msra.mxu0 0.0
        %1241 = vmatprep.subr.mxu0 0.0
        %1242 = vmatpush1.xpose.msra.mxu0 0.0
        %1243 = vmatprep.subr.mxu0 0.0
        %1244 = vmatpush1.xpose.msra.mxu0 0.0
        %1245 = vmatprep.subr.mxu0 0.0
        %1246 = vmatpush1.xpose.msra.mxu0 0.0
        %1247 = vmatprep.subr.mxu0 0.0
        %1248 = vmatpush1.xpose.msra.mxu0 0.0
        %1249 = vmatprep.subr.mxu0 0.0
        %1250 = vmatpush1.xpose.msra.mxu0 0.0
        %1251 = vmatprep.subr.mxu0 0.0
        %1252 = vmatpush1.xpose.msra.mxu0 0.0
        %1253 = vmatprep.subr.mxu0 0.0
        %1254 = vmatpush1.xpose.msra.mxu0 0.0
        %1255 = vmatprep.subr.mxu0 0.0
        %1256 = vmatpush1.xpose.msra.mxu0 0.0
        %1257 = vmatprep.subr.mxu0 0.0
        %1258 = vmatpush1.xpose.msra.mxu0 0.0
        %1259 = vmatprep.subr.mxu0 0.0
        %1260 = vmatpush1.xpose.msra.mxu0 0.0
        %1261 = vmatprep.subr.mxu0 0.0
        %1262 = vmatpush1.xpose.msra.mxu0 0.0
        %1263 = vmatprep.subr.mxu0 0.0
        %1264 = vmatpush1.xpose.msra.mxu0 0.0
        %1265 = vmatprep.subr.mxu0 0.0
        %1266 = vmatpush1.xpose.msra.mxu0 0.0
        %1267 = vmatprep.mubr.f32.mxu0 0.0
        %1268 = vmatmul.mubr.f32.gmra.mrb[0].mxu0 %v1201
        %v1269 = vpop.f32.mrb[0].mxu0
        %v1270 = vadd.f32 0.0, %v1269
        %v1271 = vpop.f32.mrb[0].mxu0
        %1272 = vdwg.mxu0
        %v1274 = vsel %vm469, %v464, 0
        %1276 = vmatprep.subr.mxu0 0.0
        %1277 = vmatpush1.xpose.msra.mxu0 %v1274
        %1278 = vmatprep.subr.mxu0 0.0
        %1279 = vmatpush1.xpose.msra.mxu0 0.0
        %1280 = vmatprep.subr.mxu0 0.0
        %1281 = vmatpush1.xpose.msra.mxu0 0.0
        %1282 = vmatprep.subr.mxu0 0.0
        %1283 = vmatpush1.xpose.msra.mxu0 0.0
        %1284 = vmatprep.subr.mxu0 0.0
        %1285 = vmatpush1.xpose.msra.mxu0 0.0
        %1286 = vmatprep.subr.mxu0 0.0
        %1287 = vmatpush1.xpose.msra.mxu0 0.0
        %1288 = vmatprep.subr.mxu0 0.0
        %1289 = vmatpush1.xpose.msra.mxu0 0.0
        %1290 = vmatprep.subr.mxu0 0.0
        %1291 = vmatpush1.xpose.msra.mxu0 0.0
        %1292 = vmatprep.subr.mxu0 0.0
        %1293 = vmatpush1.xpose.msra.mxu0 0.0
        %1294 = vmatprep.subr.mxu0 0.0
        %1295 = vmatpush1.xpose.msra.mxu0 0.0
        %1296 = vmatprep.subr.mxu0 0.0
        %1297 = vmatpush1.xpose.msra.mxu0 0.0
        %1298 = vmatprep.subr.mxu0 0.0
        %1299 = vmatpush1.xpose.msra.mxu0 0.0
        %1300 = vmatprep.subr.mxu0 0.0
        %1301 = vmatpush1.xpose.msra.mxu0 0.0
        %1302 = vmatprep.subr.mxu0 0.0
        %1303 = vmatpush1.xpose.msra.mxu0 0.0
        %1304 = vmatprep.subr.mxu0 0.0
        %1305 = vmatpush1.xpose.msra.mxu0 0.0
        %1306 = vmatprep.subr.mxu0 0.0
        %1307 = vmatpush1.xpose.msra.mxu0 0.0
        %1308 = vmatprep.subr.mxu0 0.0
        %1309 = vmatpush1.xpose.msra.mxu0 0.0
        %1310 = vmatprep.subr.mxu0 0.0
        %1311 = vmatpush1.xpose.msra.mxu0 0.0
        %1312 = vmatprep.subr.mxu0 0.0
        %1313 = vmatpush1.xpose.msra.mxu0 0.0
        %1314 = vmatprep.subr.mxu0 0.0
        %1315 = vmatpush1.xpose.msra.mxu0 0.0
        %1316 = vmatprep.subr.mxu0 0.0
        %1317 = vmatpush1.xpose.msra.mxu0 0.0
        %1318 = vmatprep.subr.mxu0 0.0
        %1319 = vmatpush1.xpose.msra.mxu0 0.0
        %1320 = vmatprep.subr.mxu0 0.0
        %1321 = vmatpush1.xpose.msra.mxu0 0.0
        %1322 = vmatprep.subr.mxu0 0.0
        %1323 = vmatpush1.xpose.msra.mxu0 0.0
        %1324 = vmatprep.subr.mxu0 0.0
        %1325 = vmatpush1.xpose.msra.mxu0 0.0
        %1326 = vmatprep.subr.mxu0 0.0
        %1327 = vmatpush1.xpose.msra.mxu0 0.0
        %1328 = vmatprep.subr.mxu0 0.0
        %1329 = vmatpush1.xpose.msra.mxu0 0.0
        %1330 = vmatprep.subr.mxu0 0.0
        %1331 = vmatpush1.xpose.msra.mxu0 0.0
        %1332 = vmatprep.subr.mxu0 0.0
        %1333 = vmatpush1.xpose.msra.mxu0 0.0
        %1334 = vmatprep.subr.mxu0 0.0
        %1335 = vmatpush1.xpose.msra.mxu0 0.0
        %1336 = vmatprep.subr.mxu0 0.0
        %1337 = vmatpush1.xpose.msra.mxu0 0.0
        %1338 = vmatprep.subr.mxu0 0.0
        %1339 = vmatpush1.xpose.msra.mxu0 0.0
        %1340 = vmatprep.mubr.f32.mxu0 0.0
        %1341 = vmatmul.mubr.f32.gmra.mrb[0].mxu0 %v1274
        %v1342 = vpop.f32.mrb[0].mxu0
        %v1343 = vadd.f32 0.0, %v1342
        %v1344 = vpop.f32.mrb[0].mxu0
        %1345 = vdwg.mxu0
        %v1347 = vsel %vm469, %v465, 0
        %1349 = vmatprep.subr.mxu0 0.0
        %1350 = vmatpush1.xpose.msra.mxu0 %v1347
        %1351 = vmatprep.subr.mxu0 0.0
        %1352 = vmatpush1.xpose.msra.mxu0 0.0
        %1353 = vmatprep.subr.mxu0 0.0
        %1354 = vmatpush1.xpose.msra.mxu0 0.0
        %1355 = vmatprep.subr.mxu0 0.0
        %1356 = vmatpush1.xpose.msra.mxu0 0.0
        %1357 = vmatprep.subr.mxu0 0.0
        %1358 = vmatpush1.xpose.msra.mxu0 0.0
        %1359 = vmatprep.subr.mxu0 0.0
        %1360 = vmatpush1.xpose.msra.mxu0 0.0
        %1361 = vmatprep.subr.mxu0 0.0
        %1362 = vmatpush1.xpose.msra.mxu0 0.0
        %1363 = vmatprep.subr.mxu0 0.0
        %1364 = vmatpush1.xpose.msra.mxu0 0.0
        %1365 = vmatprep.subr.mxu0 0.0
        %1366 = vmatpush1.xpose.msra.mxu0 0.0
        %1367 = vmatprep.subr.mxu0 0.0
        %1368 = vmatpush1.xpose.msra.mxu0 0.0
        %1369 = vmatprep.subr.mxu0 0.0
        %1370 = vmatpush1.xpose.msra.mxu0 0.0
        %1371 = vmatprep.subr.mxu0 0.0
        %1372 = vmatpush1.xpose.msra.mxu0 0.0
        %1373 = vmatprep.subr.mxu0 0.0
        %1374 = vmatpush1.xpose.msra.mxu0 0.0
        %1375 = vmatprep.subr.mxu0 0.0
        %1376 = vmatpush1.xpose.msra.mxu0 0.0
        %1377 = vmatprep.subr.mxu0 0.0
        %1378 = vmatpush1.xpose.msra.mxu0 0.0
        %1379 = vmatprep.subr.mxu0 0.0
        %1380 = vmatpush1.xpose.msra.mxu0 0.0
        %1381 = vmatprep.subr.mxu0 0.0
        %1382 = vmatpush1.xpose.msra.mxu0 0.0
        %1383 = vmatprep.subr.mxu0 0.0
        %1384 = vmatpush1.xpose.msra.mxu0 0.0
        %1385 = vmatprep.subr.mxu0 0.0
        %1386 = vmatpush1.xpose.msra.mxu0 0.0
        %1387 = vmatprep.subr.mxu0 0.0
        %1388 = vmatpush1.xpose.msra.mxu0 0.0
        %1389 = vmatprep.subr.mxu0 0.0
        %1390 = vmatpush1.xpose.msra.mxu0 0.0
        %1391 = vmatprep.subr.mxu0 0.0
        %1392 = vmatpush1.xpose.msra.mxu0 0.0
        %1393 = vmatprep.subr.mxu0 0.0
        %1394 = vmatpush1.xpose.msra.mxu0 0.0
        %1395 = vmatprep.subr.mxu0 0.0
        %1396 = vmatpush1.xpose.msra.mxu0 0.0
        %1397 = vmatprep.subr.mxu0 0.0
        %1398 = vmatpush1.xpose.msra.mxu0 0.0
        %1399 = vmatprep.subr.mxu0 0.0
        %1400 = vmatpush1.xpose.msra.mxu0 0.0
        %1401 = vmatprep.subr.mxu0 0.0
        %1402 = vmatpush1.xpose.msra.mxu0 0.0
        %1403 = vmatprep.subr.mxu0 0.0
        %1404 = vmatpush1.xpose.msra.mxu0 0.0
        %1405 = vmatprep.subr.mxu0 0.0
        %1406 = vmatpush1.xpose.msra.mxu0 0.0
        %1407 = vmatprep.subr.mxu0 0.0
        %1408 = vmatpush1.xpose.msra.mxu0 0.0
        %1409 = vmatprep.subr.mxu0 0.0
        %1410 = vmatpush1.xpose.msra.mxu0 0.0
        %1411 = vmatprep.subr.mxu0 0.0
        %1412 = vmatpush1.xpose.msra.mxu0 0.0
        %1413 = vmatprep.mubr.f32.mxu0 0.0
        %1414 = vmatmul.mubr.f32.gmra.mrb[0].mxu0 %v1347
        %v1415 = vpop.f32.mrb[0].mxu0
        %v1416 = vadd.f32 0.0, %v1415
        %v1417 = vpop.f32.mrb[0].mxu0
        %1418 = vdwg.mxu0
        %v1420 = vsel %vm469, %v466, 0
        %1422 = vmatprep.subr.mxu0 0.0
        %1423 = vmatpush1.xpose.msra.mxu0 %v1420
        %1424 = vmatprep.subr.mxu0 0.0
        %1425 = vmatpush1.xpose.msra.mxu0 0.0
        %1426 = vmatprep.subr.mxu0 0.0
        %1427 = vmatpush1.xpose.msra.mxu0 0.0
        %1428 = vmatprep.subr.mxu0 0.0
        %1429 = vmatpush1.xpose.msra.mxu0 0.0
        %1430 = vmatprep.subr.mxu0 0.0
        %1431 = vmatpush1.xpose.msra.mxu0 0.0
        %1432 = vmatprep.subr.mxu0 0.0
        %1433 = vmatpush1.xpose.msra.mxu0 0.0
        %1434 = vmatprep.subr.mxu0 0.0
        %1435 = vmatpush1.xpose.msra.mxu0 0.0
        %1436 = vmatprep.subr.mxu0 0.0
        %1437 = vmatpush1.xpose.msra.mxu0 0.0
        %1438 = vmatprep.subr.mxu0 0.0
        %1439 = vmatpush1.xpose.msra.mxu0 0.0
        %1440 = vmatprep.subr.mxu0 0.0
        %1441 = vmatpush1.xpose.msra.mxu0 0.0
        %1442 = vmatprep.subr.mxu0 0.0
        %1443 = vmatpush1.xpose.msra.mxu0 0.0
        %1444 = vmatprep.subr.mxu0 0.0
        %1445 = vmatpush1.xpose.msra.mxu0 0.0
        %1446 = vmatprep.subr.mxu0 0.0
        %1447 = vmatpush1.xpose.msra.mxu0 0.0
        %1448 = vmatprep.subr.mxu0 0.0
        %1449 = vmatpush1.xpose.msra.mxu0 0.0
        %1450 = vmatprep.subr.mxu0 0.0
        %1451 = vmatpush1.xpose.msra.mxu0 0.0
        %1452 = vmatprep.subr.mxu0 0.0
        %1453 = vmatpush1.xpose.msra.mxu0 0.0
        %1454 = vmatprep.subr.mxu0 0.0
        %1455 = vmatpush1.xpose.msra.mxu0 0.0
        %1456 = vmatprep.subr.mxu0 0.0
        %1457 = vmatpush1.xpose.msra.mxu0 0.0
        %1458 = vmatprep.subr.mxu0 0.0
        %1459 = vmatpush1.xpose.msra.mxu0 0.0
        %1460 = vmatprep.subr.mxu0 0.0
        %1461 = vmatpush1.xpose.msra.mxu0 0.0
        %1462 = vmatprep.subr.mxu0 0.0
        %1463 = vmatpush1.xpose.msra.mxu0 0.0
        %1464 = vmatprep.subr.mxu0 0.0
        %1465 = vmatpush1.xpose.msra.mxu0 0.0
        %1466 = vmatprep.subr.mxu0 0.0
        %1467 = vmatpush1.xpose.msra.mxu0 0.0
        %1468 = vmatprep.subr.mxu0 0.0
        %1469 = vmatpush1.xpose.msra.mxu0 0.0
        %1470 = vmatprep.subr.mxu0 0.0
        %1471 = vmatpush1.xpose.msra.mxu0 0.0
        %1472 = vmatprep.subr.mxu0 0.0
        %1473 = vmatpush1.xpose.msra.mxu0 0.0
        %1474 = vmatprep.subr.mxu0 0.0
        %1475 = vmatpush1.xpose.msra.mxu0 0.0
        %1476 = vmatprep.subr.mxu0 0.0
        %1477 = vmatpush1.xpose.msra.mxu0 0.0
        %1478 = vmatprep.subr.mxu0 0.0
        %1479 = vmatpush1.xpose.msra.mxu0 0.0
        %1480 = vmatprep.subr.mxu0 0.0
        %1481 = vmatpush1.xpose.msra.mxu0 0.0
        %1482 = vmatprep.subr.mxu0 0.0
        %1483 = vmatpush1.xpose.msra.mxu0 0.0
        %1484 = vmatprep.subr.mxu0 0.0
        %1485 = vmatpush1.xpose.msra.mxu0 0.0
        %1486 = vmatprep.mubr.f32.mxu0 0.0
        %1487 = vmatmul.mubr.f32.gmra.mrb[0].mxu0 %v1420
        %v1488 = vpop.f32.mrb[0].mxu0
        %v1489 = vadd.f32 0.0, %v1488
        %v1490 = vpop.f32.mrb[0].mxu0
        %1491 = vdwg.mxu0
        %v1493 = vsel %vm469, %v467, 0
        %1495 = vmatprep.subr.mxu0 0.0
        %1496 = vmatpush1.xpose.msra.mxu0 %v1493
        %1497 = vmatprep.subr.mxu0 0.0
        %1498 = vmatpush1.xpose.msra.mxu0 0.0
        %1499 = vmatprep.subr.mxu0 0.0
        %1500 = vmatpush1.xpose.msra.mxu0 0.0
        %1501 = vmatprep.subr.mxu0 0.0
        %1502 = vmatpush1.xpose.msra.mxu0 0.0
        %1503 = vmatprep.subr.mxu0 0.0
        %1504 = vmatpush1.xpose.msra.mxu0 0.0
        %1505 = vmatprep.subr.mxu0 0.0
        %1506 = vmatpush1.xpose.msra.mxu0 0.0
        %1507 = vmatprep.subr.mxu0 0.0
        %1508 = vmatpush1.xpose.msra.mxu0 0.0
        %1509 = vmatprep.subr.mxu0 0.0
        %1510 = vmatpush1.xpose.msra.mxu0 0.0
        %1511 = vmatprep.subr.mxu0 0.0
        %1512 = vmatpush1.xpose.msra.mxu0 0.0
        %1513 = vmatprep.subr.mxu0 0.0
        %1514 = vmatpush1.xpose.msra.mxu0 0.0
        %1515 = vmatprep.subr.mxu0 0.0
        %1516 = vmatpush1.xpose.msra.mxu0 0.0
        %1517 = vmatprep.subr.mxu0 0.0
        %1518 = vmatpush1.xpose.msra.mxu0 0.0
        %1519 = vmatprep.subr.mxu0 0.0
        %1520 = vmatpush1.xpose.msra.mxu0 0.0
        %1521 = vmatprep.subr.mxu0 0.0
        %1522 = vmatpush1.xpose.msra.mxu0 0.0
        %1523 = vmatprep.subr.mxu0 0.0
        %1524 = vmatpush1.xpose.msra.mxu0 0.0
        %1525 = vmatprep.subr.mxu0 0.0
        %1526 = vmatpush1.xpose.msra.mxu0 0.0
        %1527 = vmatprep.subr.mxu0 0.0
        %1528 = vmatpush1.xpose.msra.mxu0 0.0
        %1529 = vmatprep.subr.mxu0 0.0
        %1530 = vmatpush1.xpose.msra.mxu0 0.0
        %1531 = vmatprep.subr.mxu0 0.0
        %1532 = vmatpush1.xpose.msra.mxu0 0.0
        %1533 = vmatprep.subr.mxu0 0.0
        %1534 = vmatpush1.xpose.msra.mxu0 0.0
        %1535 = vmatprep.subr.mxu0 0.0
        %1536 = vmatpush1.xpose.msra.mxu0 0.0
        %1537 = vmatprep.subr.mxu0 0.0
        %1538 = vmatpush1.xpose.msra.mxu0 0.0
        %1539 = vmatprep.subr.mxu0 0.0
        %1540 = vmatpush1.xpose.msra.mxu0 0.0
        %1541 = vmatprep.subr.mxu0 0.0
        %1542 = vmatpush1.xpose.msra.mxu0 0.0
        %1543 = vmatprep.subr.mxu0 0.0
        %1544 = vmatpush1.xpose.msra.mxu0 0.0
        %1545 = vmatprep.subr.mxu0 0.0
        %1546 = vmatpush1.xpose.msra.mxu0 0.0
        %1547 = vmatprep.subr.mxu0 0.0
        %1548 = vmatpush1.xpose.msra.mxu0 0.0
        %1549 = vmatprep.subr.mxu0 0.0
        %1550 = vmatpush1.xpose.msra.mxu0 0.0
        %1551 = vmatprep.subr.mxu0 0.0
        %1552 = vmatpush1.xpose.msra.mxu0 0.0
        %1553 = vmatprep.subr.mxu0 0.0
        %1554 = vmatpush1.xpose.msra.mxu0 0.0
        %1555 = vmatprep.subr.mxu0 0.0
        %1556 = vmatpush1.xpose.msra.mxu0 0.0
        %1557 = vmatprep.subr.mxu0 0.0
        %1558 = vmatpush1.xpose.msra.mxu0 0.0
        %1559 = vmatprep.mubr.f32.mxu0 0.0
        %1560 = vmatmul.mubr.f32.gmra.mrb[0].mxu0 %v1493
        %v1561 = vpop.f32.mrb[0].mxu0
        %v1562 = vadd.f32 0.0, %v1561
        %v1563 = vpop.f32.mrb[0].mxu0
        %1564 = vdwg.mxu0
        %v1566 = vsel %vm469, %v468, 0
        %1568 = vmatprep.subr.mxu0 0.0
        %1569 = vmatpush1.xpose.msra.mxu0 %v1566
        %1570 = vmatprep.subr.mxu0 0.0
        %1571 = vmatpush1.xpose.msra.mxu0 0.0
        %1572 = vmatprep.subr.mxu0 0.0
        %1573 = vmatpush1.xpose.msra.mxu0 0.0
        %1574 = vmatprep.subr.mxu0 0.0
        %1575 = vmatpush1.xpose.msra.mxu0 0.0
        %1576 = vmatprep.subr.mxu0 0.0
        %1577 = vmatpush1.xpose.msra.mxu0 0.0
        %1578 = vmatprep.subr.mxu0 0.0
        %1579 = vmatpush1.xpose.msra.mxu0 0.0
        %1580 = vmatprep.subr.mxu0 0.0
        %1581 = vmatpush1.xpose.msra.mxu0 0.0
        %1582 = vmatprep.subr.mxu0 0.0
        %1583 = vmatpush1.xpose.msra.mxu0 0.0
        %1584 = vmatprep.subr.mxu0 0.0
        %1585 = vmatpush1.xpose.msra.mxu0 0.0
        %1586 = vmatprep.subr.mxu0 0.0
        %1587 = vmatpush1.xpose.msra.mxu0 0.0
        %1588 = vmatprep.subr.mxu0 0.0
        %1589 = vmatpush1.xpose.msra.mxu0 0.0
        %1590 = vmatprep.subr.mxu0 0.0
        %1591 = vmatpush1.xpose.msra.mxu0 0.0
        %1592 = vmatprep.subr.mxu0 0.0
        %1593 = vmatpush1.xpose.msra.mxu0 0.0
        %1594 = vmatprep.subr.mxu0 0.0
        %1595 = vmatpush1.xpose.msra.mxu0 0.0
        %1596 = vmatprep.subr.mxu0 0.0
        %1597 = vmatpush1.xpose.msra.mxu0 0.0
        %1598 = vmatprep.subr.mxu0 0.0
        %1599 = vmatpush1.xpose.msra.mxu0 0.0
        %1600 = vmatprep.subr.mxu0 0.0
        %1601 = vmatpush1.xpose.msra.mxu0 0.0
        %1602 = vmatprep.subr.mxu0 0.0
        %1603 = vmatpush1.xpose.msra.mxu0 0.0
        %1604 = vmatprep.subr.mxu0 0.0
        %1605 = vmatpush1.xpose.msra.mxu0 0.0
        %1606 = vmatprep.subr.mxu0 0.0
        %1607 = vmatpush1.xpose.msra.mxu0 0.0
        %1608 = vmatprep.subr.mxu0 0.0
        %1609 = vmatpush1.xpose.msra.mxu0 0.0
        %1610 = vmatprep.subr.mxu0 0.0
        %1611 = vmatpush1.xpose.msra.mxu0 0.0
        %1612 = vmatprep.subr.mxu0 0.0
        %1613 = vmatpush1.xpose.msra.mxu0 0.0
        %1614 = vmatprep.subr.mxu0 0.0
        %1615 = vmatpush1.xpose.msra.mxu0 0.0
        %1616 = vmatprep.subr.mxu0 0.0
        %1617 = vmatpush1.xpose.msra.mxu0 0.0
        %1618 = vmatprep.subr.mxu0 0.0
        %1619 = vmatpush1.xpose.msra.mxu0 0.0
        %1620 = vmatprep.subr.mxu0 0.0
        %1621 = vmatpush1.xpose.msra.mxu0 0.0
        %1622 = vmatprep.subr.mxu0 0.0
        %1623 = vmatpush1.xpose.msra.mxu0 0.0
        %1624 = vmatprep.subr.mxu0 0.0
        %1625 = vmatpush1.xpose.msra.mxu0 0.0
        %1626 = vmatprep.subr.mxu0 0.0
        %1627 = vmatpush1.xpose.msra.mxu0 0.0
        %1628 = vmatprep.subr.mxu0 0.0
        %1629 = vmatpush1.xpose.msra.mxu0 0.0
        %1630 = vmatprep.subr.mxu0 0.0
        %1631 = vmatpush1.xpose.msra.mxu0 0.0
        %1632 = vmatprep.mubr.f32.mxu0 0.0
        %1633 = vmatmul.mubr.f32.gmra.mrb[0].mxu0 %v1566
        %v1634 = vpop.f32.mrb[0].mxu0
        %v1635 = vadd.f32 0.0, %v1634
        %v1636 = vpop.f32.mrb[0].mxu0
        %1637 = vdwg.mxu0
        %v1638 = vcombine.low %v540, %v686
        %v1639 = vcombine.high %v540, %v686
        %v1641 = vunpack.c.l.s4 1983009808
        %v1642 = vunpack.c.0.s8 %v1641
        %v1643 = vlaneseq
        %v1644 = vshrl.u32 %v1643, 7
        %v1645 = vsub.s32 %v1642, %v1644
        %v1646 = vrot.slane %v1638, %v1645
        %v1648 = vunpack.c.l.s4 1983009808
        %v1649 = vunpack.c.0.s8 %v1648
        %v1650 = vlaneseq
        %v1651 = vshrl.u32 %v1650, 7
        %v1652 = vsub.s32 %v1649, %v1651
        %v1653 = vrot.slane %v1639, %v1652
        %v1654 = vcombine.low %v613, %v759
        %v1655 = vcombine.high %v613, %v759
        %v1657 = vunpack.c.l.s4 1983009808
        %v1658 = vunpack.c.0.s8 %v1657
        %v1659 = vlaneseq
        %v1660 = vshrl.u32 %v1659, 7
        %v1661 = vsub.s32 %v1658, %v1660
        %v1662 = vrot.slane %v1654, %v1661
        %v1664 = vunpack.c.l.s4 1983009808
        %v1665 = vunpack.c.0.s8 %v1664
        %v1666 = vlaneseq
        %v1667 = vshrl.u32 %v1666, 7
        %v1668 = vsub.s32 %v1665, %v1667
        %v1669 = vrot.slane %v1655, %v1668
        %v1670 = vcombine.low %v832, %v978
        %v1671 = vcombine.high %v832, %v978
        %v1673 = vunpack.c.l.s4 1983009808
        %v1674 = vunpack.c.0.s8 %v1673
        %v1675 = vlaneseq
        %v1676 = vshrl.u32 %v1675, 7
        %v1677 = vsub.s32 %v1674, %v1676
        %v1678 = vrot.slane %v1670, %v1677
        %v1680 = vunpack.c.l.s4 1983009808
        %v1681 = vunpack.c.0.s8 %v1680
        %v1682 = vlaneseq
        %v1683 = vshrl.u32 %v1682, 7
        %v1684 = vsub.s32 %v1681, %v1683
        %v1685 = vrot.slane %v1671, %v1684
        %v1686 = vcombine.low %v905, %v1051
        %v1687 = vcombine.high %v905, %v1051
        %v1689 = vunpack.c.l.s4 1983009808
        %v1690 = vunpack.c.0.s8 %v1689
        %v1691 = vlaneseq
        %v1692 = vshrl.u32 %v1691, 7
        %v1693 = vsub.s32 %v1690, %v1692
        %v1694 = vrot.slane %v1686, %v1693
        %v1696 = vunpack.c.l.s4 1983009808
        %v1697 = vunpack.c.0.s8 %v1696
        %v1698 = vlaneseq
        %v1699 = vshrl.u32 %v1698, 7
        %v1700 = vsub.s32 %v1697, %v1699
        %v1701 = vrot.slane %v1687, %v1700
        %v1702 = vcombine.low %v1646, %v1662
        %v1703 = vcombine.high %v1646, %v1662
        %v1705 = vunpack.c.l.s4 1934713408
        %v1706 = vunpack.c.0.s8 %v1705
        %v1707 = vlaneseq
        %v1708 = vshrl.u32 %v1707, 7
        %v1709 = vsub.s32 %v1706, %v1708
        %v1710 = vrot.slane %v1702, %v1709
        %v1712 = vunpack.c.l.s4 1934713408
        %v1713 = vunpack.c.0.s8 %v1712
        %v1714 = vlaneseq
        %v1715 = vshrl.u32 %v1714, 7
        %v1716 = vsub.s32 %v1713, %v1715
        %v1717 = vrot.slane %v1703, %v1716
        %v1718 = vcombine.low %v1653, %v1669
        %v1719 = vcombine.high %v1653, %v1669
        %v1721 = vunpack.c.l.s4 1934713408
        %v1722 = vunpack.c.0.s8 %v1721
        %v1723 = vlaneseq
        %v1724 = vshrl.u32 %v1723, 7
        %v1725 = vsub.s32 %v1722, %v1724
        %v1726 = vrot.slane %v1718, %v1725
        %v1728 = vunpack.c.l.s4 1934713408
        %v1729 = vunpack.c.0.s8 %v1728
        %v1730 = vlaneseq
        %v1731 = vshrl.u32 %v1730, 7
        %v1732 = vsub.s32 %v1729, %v1731
        %v1733 = vrot.slane %v1719, %v1732
        %v1734 = vcombine.low %v1678, %v1694
        %v1735 = vcombine.high %v1678, %v1694
        %v1737 = vunpack.c.l.s4 1934713408
        %v1738 = vunpack.c.0.s8 %v1737
        %v1739 = vlaneseq
        %v1740 = vshrl.u32 %v1739, 7
        %v1741 = vsub.s32 %v1738, %v1740
        %v1742 = vrot.slane %v1734, %v1741
        %v1744 = vunpack.c.l.s4 1934713408
        %v1745 = vunpack.c.0.s8 %v1744
        %v1746 = vlaneseq
        %v1747 = vshrl.u32 %v1746, 7
        %v1748 = vsub.s32 %v1745, %v1747
        %v1749 = vrot.slane %v1735, %v1748
        %v1750 = vcombine.low %v1685, %v1701
        %v1751 = vcombine.high %v1685, %v1701
        %v1753 = vunpack.c.l.s4 1934713408
        %v1754 = vunpack.c.0.s8 %v1753
        %v1755 = vlaneseq
        %v1756 = vshrl.u32 %v1755, 7
        %v1757 = vsub.s32 %v1754, %v1756
        %v1758 = vrot.slane %v1750, %v1757
        %v1760 = vunpack.c.l.s4 1934713408
        %v1761 = vunpack.c.0.s8 %v1760
        %v1762 = vlaneseq
        %v1763 = vshrl.u32 %v1762, 7
        %v1764 = vsub.s32 %v1761, %v1763
        %v1765 = vrot.slane %v1751, %v1764
        %v1766 = vcombine.low %v1710, %v1742
        %v1767 = vcombine.high %v1710, %v1742
        %v1768 = vcombine.low %v1717, %v1749
        %v1769 = vcombine.high %v1717, %v1749
        %v1770 = vcombine.low %v1726, %v1758
        %v1771 = vcombine.high %v1726, %v1758
        %v1772 = vcombine.low %v1733, %v1765
        %v1773 = vcombine.high %v1733, %v1765
        %v1774 = vcombine.low %v1124, %v1270
        %v1775 = vcombine.high %v1124, %v1270
        %v1777 = vunpack.c.l.s4 1983009808
        %v1778 = vunpack.c.0.s8 %v1777
        %v1779 = vlaneseq
        %v1780 = vshrl.u32 %v1779, 7
        %v1781 = vsub.s32 %v1778, %v1780
        %v1782 = vrot.slane %v1774, %v1781
        %v1784 = vunpack.c.l.s4 1983009808
        %v1785 = vunpack.c.0.s8 %v1784
        %v1786 = vlaneseq
        %v1787 = vshrl.u32 %v1786, 7
        %v1788 = vsub.s32 %v1785, %v1787
        %v1789 = vrot.slane %v1775, %v1788
        %v1790 = vcombine.low %v1197, %v1343
        %v1791 = vcombine.high %v1197, %v1343
        %v1793 = vunpack.c.l.s4 1983009808
        %v1794 = vunpack.c.0.s8 %v1793
        %v1795 = vlaneseq
        %v1796 = vshrl.u32 %v1795, 7
        %v1797 = vsub.s32 %v1794, %v1796
        %v1798 = vrot.slane %v1790, %v1797
        %v1800 = vunpack.c.l.s4 1983009808
        %v1801 = vunpack.c.0.s8 %v1800
        %v1802 = vlaneseq
        %v1803 = vshrl.u32 %v1802, 7
        %v1804 = vsub.s32 %v1801, %v1803
        %v1805 = vrot.slane %v1791, %v1804
        %v1806 = vcombine.low %v1416, %v1562
        %v1807 = vcombine.high %v1416, %v1562
        %v1809 = vunpack.c.l.s4 1983009808
        %v1810 = vunpack.c.0.s8 %v1809
        %v1811 = vlaneseq
        %v1812 = vshrl.u32 %v1811, 7
        %v1813 = vsub.s32 %v1810, %v1812
        %v1814 = vrot.slane %v1806, %v1813
        %v1816 = vunpack.c.l.s4 1983009808
        %v1817 = vunpack.c.0.s8 %v1816
        %v1818 = vlaneseq
        %v1819 = vshrl.u32 %v1818, 7
        %v1820 = vsub.s32 %v1817, %v1819
        %v1821 = vrot.slane %v1807, %v1820
        %v1822 = vcombine.low %v1489, %v1635
        %v1823 = vcombine.high %v1489, %v1635
        %v1825 = vunpack.c.l.s4 1983009808
        %v1826 = vunpack.c.0.s8 %v1825
        %v1827 = vlaneseq
        %v1828 = vshrl.u32 %v1827, 7
        %v1829 = vsub.s32 %v1826, %v1828
        %v1830 = vrot.slane %v1822, %v1829
        %v1832 = vunpack.c.l.s4 1983009808
        %v1833 = vunpack.c.0.s8 %v1832
        %v1834 = vlaneseq
        %v1835 = vshrl.u32 %v1834, 7
        %v1836 = vsub.s32 %v1833, %v1835
        %v1837 = vrot.slane %v1823, %v1836
        %v1838 = vcombine.low %v1782, %v1798
        %v1839 = vcombine.high %v1782, %v1798
        %v1841 = vunpack.c.l.s4 1934713408
        %v1842 = vunpack.c.0.s8 %v1841
        %v1843 = vlaneseq
        %v1844 = vshrl.u32 %v1843, 7
        %v1845 = vsub.s32 %v1842, %v1844
        %v1846 = vrot.slane %v1838, %v1845
        %v1848 = vunpack.c.l.s4 1934713408
        %v1849 = vunpack.c.0.s8 %v1848
        %v1850 = vlaneseq
        %v1851 = vshrl.u32 %v1850, 7
        %v1852 = vsub.s32 %v1849, %v1851
        %v1853 = vrot.slane %v1839, %v1852
        %v1854 = vcombine.low %v1789, %v1805
        %v1855 = vcombine.high %v1789, %v1805
        %v1857 = vunpack.c.l.s4 1934713408
        %v1858 = vunpack.c.0.s8 %v1857
        %v1859 = vlaneseq
        %v1860 = vshrl.u32 %v1859, 7
        %v1861 = vsub.s32 %v1858, %v1860
        %v1862 = vrot.slane %v1854, %v1861
        %v1864 = vunpack.c.l.s4 1934713408
        %v1865 = vunpack.c.0.s8 %v1864
        %v1866 = vlaneseq
        %v1867 = vshrl.u32 %v1866, 7
        %v1868 = vsub.s32 %v1865, %v1867
        %v1869 = vrot.slane %v1855, %v1868
        %v1870 = vcombine.low %v1814, %v1830
        %v1871 = vcombine.high %v1814, %v1830
        %v1873 = vunpack.c.l.s4 1934713408
        %v1874 = vunpack.c.0.s8 %v1873
        %v1875 = vlaneseq
        %v1876 = vshrl.u32 %v1875, 7
        %v1877 = vsub.s32 %v1874, %v1876
        %v1878 = vrot.slane %v1870, %v1877
        %v1880 = vunpack.c.l.s4 1934713408
        %v1881 = vunpack.c.0.s8 %v1880
        %v1882 = vlaneseq
        %v1883 = vshrl.u32 %v1882, 7
        %v1884 = vsub.s32 %v1881, %v1883
        %v1885 = vrot.slane %v1871, %v1884
        %v1886 = vcombine.low %v1821, %v1837
        %v1887 = vcombine.high %v1821, %v1837
        %v1889 = vunpack.c.l.s4 1934713408
        %v1890 = vunpack.c.0.s8 %v1889
        %v1891 = vlaneseq
        %v1892 = vshrl.u32 %v1891, 7
        %v1893 = vsub.s32 %v1890, %v1892
        %v1894 = vrot.slane %v1886, %v1893
        %v1896 = vunpack.c.l.s4 1934713408
        %v1897 = vunpack.c.0.s8 %v1896
        %v1898 = vlaneseq
        %v1899 = vshrl.u32 %v1898, 7
        %v1900 = vsub.s32 %v1897, %v1899
        %v1901 = vrot.slane %v1887, %v1900
        %v1902 = vcombine.low %v1846, %v1878
        %v1903 = vcombine.high %v1846, %v1878
        %v1904 = vcombine.low %v1853, %v1885
        %v1905 = vcombine.high %v1853, %v1885
        %v1906 = vcombine.low %v1862, %v1894
        %v1907 = vcombine.high %v1862, %v1894
        %v1908 = vcombine.low %v1869, %v1901
        %v1909 = vcombine.high %v1869, %v1901
        %v1910 = vcombine.low %v1766, %v1768
        %v1911 = vcombine.high %v1766, %v1768
        %v1913 = vunpack.c.l.s4 1983009808
        %v1914 = vunpack.c.0.s8 %v1913
        %v1915 = vlaneseq
        %v1916 = vshrl.u32 %v1915, 7
        %v1917 = vsub.s32 %v1914, %v1916
        %v1918 = vrot.slane %v1910, %v1917
        %v1920 = vunpack.c.l.s4 1983009808
        %v1921 = vunpack.c.0.s8 %v1920
        %v1922 = vlaneseq
        %v1923 = vshrl.u32 %v1922, 7
        %v1924 = vsub.s32 %v1921, %v1923
        %v1925 = vrot.slane %v1911, %v1924
        %v1926 = vcombine.low %v1767, %v1769
        %v1927 = vcombine.high %v1767, %v1769
        %v1929 = vunpack.c.l.s4 1983009808
        %v1930 = vunpack.c.0.s8 %v1929
        %v1931 = vlaneseq
        %v1932 = vshrl.u32 %v1931, 7
        %v1933 = vsub.s32 %v1930, %v1932
        %v1934 = vrot.slane %v1926, %v1933
        %v1936 = vunpack.c.l.s4 1983009808
        %v1937 = vunpack.c.0.s8 %v1936
        %v1938 = vlaneseq
        %v1939 = vshrl.u32 %v1938, 7
        %v1940 = vsub.s32 %v1937, %v1939
        %v1941 = vrot.slane %v1927, %v1940
        %v1942 = vcombine.low %v1770, %v1772
        %v1943 = vcombine.high %v1770, %v1772
        %v1945 = vunpack.c.l.s4 1983009808
        %v1946 = vunpack.c.0.s8 %v1945
        %v1947 = vlaneseq
        %v1948 = vshrl.u32 %v1947, 7
        %v1949 = vsub.s32 %v1946, %v1948
        %v1950 = vrot.slane %v1942, %v1949
        %v1952 = vunpack.c.l.s4 1983009808
        %v1953 = vunpack.c.0.s8 %v1952
        %v1954 = vlaneseq
        %v1955 = vshrl.u32 %v1954, 7
        %v1956 = vsub.s32 %v1953, %v1955
        %v1957 = vrot.slane %v1943, %v1956
        %v1958 = vcombine.low %v1771, %v1773
        %v1959 = vcombine.high %v1771, %v1773
        %v1961 = vunpack.c.l.s4 1983009808
        %v1962 = vunpack.c.0.s8 %v1961
        %v1963 = vlaneseq
        %v1964 = vshrl.u32 %v1963, 7
        %v1965 = vsub.s32 %v1962, %v1964
        %v1966 = vrot.slane %v1958, %v1965
        %v1968 = vunpack.c.l.s4 1983009808
        %v1969 = vunpack.c.0.s8 %v1968
        %v1970 = vlaneseq
        %v1971 = vshrl.u32 %v1970, 7
        %v1972 = vsub.s32 %v1969, %v1971
        %v1973 = vrot.slane %v1959, %v1972
        %v1974 = vcombine.low %v1918, %v1934
        %v1975 = vcombine.high %v1918, %v1934
        %v1977 = vunpack.c.l.s4 1934713408
        %v1978 = vunpack.c.0.s8 %v1977
        %v1979 = vlaneseq
        %v1980 = vshrl.u32 %v1979, 7
        %v1981 = vsub.s32 %v1978, %v1980
        %v1982 = vrot.slane %v1974, %v1981
        %v1984 = vunpack.c.l.s4 1934713408
        %v1985 = vunpack.c.0.s8 %v1984
        %v1986 = vlaneseq
        %v1987 = vshrl.u32 %v1986, 7
        %v1988 = vsub.s32 %v1985, %v1987
        %v1989 = vrot.slane %v1975, %v1988
        %v1990 = vcombine.low %v1925, %v1941
        %v1991 = vcombine.high %v1925, %v1941
        %v1993 = vunpack.c.l.s4 1934713408
        %v1994 = vunpack.c.0.s8 %v1993
        %v1995 = vlaneseq
        %v1996 = vshrl.u32 %v1995, 7
        %v1997 = vsub.s32 %v1994, %v1996
        %v1998 = vrot.slane %v1990, %v1997
        %v2000 = vunpack.c.l.s4 1934713408
        %v2001 = vunpack.c.0.s8 %v2000
        %v2002 = vlaneseq
        %v2003 = vshrl.u32 %v2002, 7
        %v2004 = vsub.s32 %v2001, %v2003
        %v2005 = vrot.slane %v1991, %v2004
        %v2006 = vcombine.low %v1950, %v1966
        %v2007 = vcombine.high %v1950, %v1966
        %v2009 = vunpack.c.l.s4 1934713408
        %v2010 = vunpack.c.0.s8 %v2009
        %v2011 = vlaneseq
        %v2012 = vshrl.u32 %v2011, 7
        %v2013 = vsub.s32 %v2010, %v2012
        %v2014 = vrot.slane %v2006, %v2013
        %v2016 = vunpack.c.l.s4 1934713408
        %v2017 = vunpack.c.0.s8 %v2016
        %v2018 = vlaneseq
        %v2019 = vshrl.u32 %v2018, 7
        %v2020 = vsub.s32 %v2017, %v2019
        %v2021 = vrot.slane %v2007, %v2020
        %v2022 = vcombine.low %v1957, %v1973
        %v2023 = vcombine.high %v1957, %v1973
        %v2025 = vunpack.c.l.s4 1934713408
        %v2026 = vunpack.c.0.s8 %v2025
        %v2027 = vlaneseq
        %v2028 = vshrl.u32 %v2027, 7
        %v2029 = vsub.s32 %v2026, %v2028
        %v2030 = vrot.slane %v2022, %v2029
        %v2032 = vunpack.c.l.s4 1934713408
        %v2033 = vunpack.c.0.s8 %v2032
        %v2034 = vlaneseq
        %v2035 = vshrl.u32 %v2034, 7
        %v2036 = vsub.s32 %v2033, %v2035
        %v2037 = vrot.slane %v2023, %v2036
        %v2038 = vcombine.low %v1982, %v2014
        %v2039 = vcombine.high %v1982, %v2014
        %v2040 = vcombine.low %v1989, %v2021
        %v2041 = vcombine.high %v1989, %v2021
        %v2042 = vcombine.low %v1998, %v2030
        %v2043 = vcombine.high %v1998, %v2030
        %v2044 = vcombine.low %v2005, %v2037
        %v2045 = vcombine.high %v2005, %v2037
        %v2046 = vcombine.low %v1902, %v1904
        %v2047 = vcombine.high %v1902, %v1904
        %v2049 = vunpack.c.l.s4 1983009808
        %v2050 = vunpack.c.0.s8 %v2049
        %v2051 = vlaneseq
        %v2052 = vshrl.u32 %v2051, 7
        %v2053 = vsub.s32 %v2050, %v2052
        %v2054 = vrot.slane %v2046, %v2053
        %v2056 = vunpack.c.l.s4 1983009808
        %v2057 = vunpack.c.0.s8 %v2056
        %v2058 = vlaneseq
        %v2059 = vshrl.u32 %v2058, 7
        %v2060 = vsub.s32 %v2057, %v2059
        %v2061 = vrot.slane %v2047, %v2060
        %v2062 = vcombine.low %v1903, %v1905
        %v2063 = vcombine.high %v1903, %v1905
        %v2065 = vunpack.c.l.s4 1983009808
        %v2066 = vunpack.c.0.s8 %v2065
        %v2067 = vlaneseq
        %v2068 = vshrl.u32 %v2067, 7
        %v2069 = vsub.s32 %v2066, %v2068
        %v2070 = vrot.slane %v2062, %v2069
        %v2072 = vunpack.c.l.s4 1983009808
        %v2073 = vunpack.c.0.s8 %v2072
        %v2074 = vlaneseq
        %v2075 = vshrl.u32 %v2074, 7
        %v2076 = vsub.s32 %v2073, %v2075
        %v2077 = vrot.slane %v2063, %v2076
        %v2078 = vcombine.low %v1906, %v1908
        %v2079 = vcombine.high %v1906, %v1908
        %v2081 = vunpack.c.l.s4 1983009808
        %v2082 = vunpack.c.0.s8 %v2081
        %v2083 = vlaneseq
        %v2084 = vshrl.u32 %v2083, 7
        %v2085 = vsub.s32 %v2082, %v2084
        %v2086 = vrot.slane %v2078, %v2085
        %v2088 = vunpack.c.l.s4 1983009808
        %v2089 = vunpack.c.0.s8 %v2088
        %v2090 = vlaneseq
        %v2091 = vshrl.u32 %v2090, 7
        %v2092 = vsub.s32 %v2089, %v2091
        %v2093 = vrot.slane %v2079, %v2092
        %v2094 = vcombine.low %v1907, %v1909
        %v2095 = vcombine.high %v1907, %v1909
        %v2097 = vunpack.c.l.s4 1983009808
        %v2098 = vunpack.c.0.s8 %v2097
        %v2099 = vlaneseq
        %v2100 = vshrl.u32 %v2099, 7
        %v2101 = vsub.s32 %v2098, %v2100
        %v2102 = vrot.slane %v2094, %v2101
        %v2104 = vunpack.c.l.s4 1983009808
        %v2105 = vunpack.c.0.s8 %v2104
        %v2106 = vlaneseq
        %v2107 = vshrl.u32 %v2106, 7
        %v2108 = vsub.s32 %v2105, %v2107
        %v2109 = vrot.slane %v2095, %v2108
        %v2110 = vcombine.low %v2054, %v2070
        %v2111 = vcombine.high %v2054, %v2070
        %v2113 = vunpack.c.l.s4 1934713408
        %v2114 = vunpack.c.0.s8 %v2113
        %v2115 = vlaneseq
        %v2116 = vshrl.u32 %v2115, 7
        %v2117 = vsub.s32 %v2114, %v2116
        %v2118 = vrot.slane %v2110, %v2117
        %v2120 = vunpack.c.l.s4 1934713408
        %v2121 = vunpack.c.0.s8 %v2120
        %v2122 = vlaneseq
        %v2123 = vshrl.u32 %v2122, 7
        %v2124 = vsub.s32 %v2121, %v2123
        %v2125 = vrot.slane %v2111, %v2124
        %v2126 = vcombine.low %v2061, %v2077
        %v2127 = vcombine.high %v2061, %v2077
        %v2129 = vunpack.c.l.s4 1934713408
        %v2130 = vunpack.c.0.s8 %v2129
        %v2131 = vlaneseq
        %v2132 = vshrl.u32 %v2131, 7
        %v2133 = vsub.s32 %v2130, %v2132
        %v2134 = vrot.slane %v2126, %v2133
        %v2136 = vunpack.c.l.s4 1934713408
        %v2137 = vunpack.c.0.s8 %v2136
        %v2138 = vlaneseq
        %v2139 = vshrl.u32 %v2138, 7
        %v2140 = vsub.s32 %v2137, %v2139
        %v2141 = vrot.slane %v2127, %v2140
        %v2142 = vcombine.low %v2086, %v2102
        %v2143 = vcombine.high %v2086, %v2102
        %v2145 = vunpack.c.l.s4 1934713408
        %v2146 = vunpack.c.0.s8 %v2145
        %v2147 = vlaneseq
        %v2148 = vshrl.u32 %v2147, 7
        %v2149 = vsub.s32 %v2146, %v2148
        %v2150 = vrot.slane %v2142, %v2149
        %v2152 = vunpack.c.l.s4 1934713408
        %v2153 = vunpack.c.0.s8 %v2152
        %v2154 = vlaneseq
        %v2155 = vshrl.u32 %v2154, 7
        %v2156 = vsub.s32 %v2153, %v2155
        %v2157 = vrot.slane %v2143, %v2156
        %v2158 = vcombine.low %v2093, %v2109
        %v2159 = vcombine.high %v2093, %v2109
        %v2161 = vunpack.c.l.s4 1934713408
        %v2162 = vunpack.c.0.s8 %v2161
        %v2163 = vlaneseq
        %v2164 = vshrl.u32 %v2163, 7
        %v2165 = vsub.s32 %v2162, %v2164
        %v2166 = vrot.slane %v2158, %v2165
        %v2168 = vunpack.c.l.s4 1934713408
        %v2169 = vunpack.c.0.s8 %v2168
        %v2170 = vlaneseq
        %v2171 = vshrl.u32 %v2170, 7
        %v2172 = vsub.s32 %v2169, %v2171
        %v2173 = vrot.slane %v2159, %v2172
        %v2174 = vcombine.low %v2118, %v2150
        %v2175 = vcombine.high %v2118, %v2150
        %v2176 = vcombine.low %v2125, %v2157
        %v2177 = vcombine.high %v2125, %v2157
        %v2178 = vcombine.low %v2134, %v2166
        %v2179 = vcombine.high %v2134, %v2166
        %v2180 = vcombine.low %v2141, %v2173
        %v2181 = vcombine.high %v2141, %v2173
        %2183 = vrot.lane.b32.xlu0 %v2039, 8
        %v2184 = vpop.permute.xlu0 %2183
        %2187 = vrot.lane.b32.xlu0 %v2040, 16
        %v2188 = vpop.permute.xlu0 %2187
        %2191 = vrot.lane.b32.xlu0 %v2041, 24
        %v2192 = vpop.permute.xlu0 %2191
        %2195 = vrot.lane.b32.xlu0 %v2042, 32
        %v2196 = vpop.permute.xlu0 %2195
        %2199 = vrot.lane.b32.xlu0 %v2043, 40
        %v2200 = vpop.permute.xlu0 %2199
        %2203 = vrot.lane.b32.xlu0 %v2044, 48
        %v2204 = vpop.permute.xlu0 %2203
        %2207 = vrot.lane.b32.xlu0 %v2045, 56
        %v2208 = vpop.permute.xlu0 %2207
        %2211 = vrot.lane.b32.xlu0 %v2174, 64
        %v2212 = vpop.permute.xlu0 %2211
        %2215 = vrot.lane.b32.xlu0 %v2175, 72
        %v2216 = vpop.permute.xlu0 %2215
        %2219 = vrot.lane.b32.xlu0 %v2176, 80
        %v2220 = vpop.permute.xlu0 %2219
        %2223 = vrot.lane.b32.xlu0 %v2177, 88
        %v2224 = vpop.permute.xlu0 %2223
        %2227 = vrot.lane.b32.xlu0 %v2178, 96
        %v2228 = vpop.permute.xlu0 %2227
        %2231 = vrot.lane.b32.xlu0 %v2179, 104
        %v2232 = vpop.permute.xlu0 %2231
        %2235 = vrot.lane.b32.xlu0 %v2180, 112
        %v2236 = vpop.permute.xlu0 %2235
        %2239 = vrot.lane.b32.xlu0 %v2181, 120
        %v2240 = vpop.permute.xlu0 %2239
        %vm2242 = vcmask 64512
        %v2243 = vsel %vm2242, %v2038, %v2184
        %v2244 = vsel %vm469, %v2243, %v2188
        %vm2245 = vcmask 195584
        %v2246 = vsel %vm2245, %v2244, %v2192
        %v2247 = vsel %vm259, %v2246, %v2196
        %vm2248 = vcmask 326656
        %v2249 = vsel %vm2248, %v2247, %v2200
        %vm2250 = vcmask 392192
        %v2251 = vsel %vm2250, %v2249, %v2204
        %vm2252 = vcmask 457728
        %v2253 = vsel %vm2252, %v2251, %v2208
        %vm2254 = vcmask 523264
        %v2255 = vsel %vm2254, %v2253, %v2212
        %vm2256 = vcmask 588800
        %v2257 = vsel %vm2256, %v2255, %v2216
        %vm2258 = vcmask 654336
        %v2259 = vsel %vm2258, %v2257, %v2220
        %vm2260 = vcmask 719872
        %v2261 = vsel %vm2260, %v2259, %v2224
        %vm2262 = vcmask 785408
        %v2263 = vsel %vm2262, %v2261, %v2228
        %vm2264 = vcmask 850944
        %v2265 = vsel %vm2264, %v2263, %v2232
        %vm2266 = vcmask 916480
        %v2267 = vsel %vm2266, %v2265, %v2236
        %vm2268 = vcmask 982016
        %v2269 = vsel %vm2268, %v2267, %v2240
        %v2270 = vld [vmem:[%s3] sm:$0xff]
        %v2271 = vxor.u32 %v2269, 2147483648
        %v2272 = vmul.f32 %v2271, 1.442695
        %v2273 = vpow.pop %v2272
        %v2274 = vadd.f32 %v2273, 1.0
        %v2275 = vrcp.pop %v2274
        %v2276 = vmul.f32 1.0, %v2275
        %v2277 = vmul.f32 %v2276, 1.2
        %v2278 = vadd.f32 %v2277, -0.1
        %v2279 = vmax.f32 %v2278, 0.0
        %v2280 = vmin.f32 %v2279, 1.0
        %v2281 = vmul.f32 %v2270, %v2280
        %2282 = vst [vmem:[%s218] sm:$0xff] %v2281
        %v2283 = vlaneseq
        %v2284 = vand.u32 %v2283, 127
        %s2285 = smul.u32 %s20, 16
        %s2286 = ssub.s32 32, %s2285
        %p2287 = scmp.lt.s32.totalorder %s2286, 16
        %s2288 = scalar_select %p2287, %s2286, 16
        %s2289 = smul.u32 %s2288, 8
        %v2290 = vstv %s2289
        %vm2291 = vcmp.lt.s32.totalorder %v2284, %v2290
        %v2292 = vsel %vm2291, 1, 0
        %v2293 = vcvt.s32.f32 %v2292
        %v2294 = vsub.f32 %v2269, -1.5826108
        %v2295 = vxor.u32 %v2294, 2147483648
        %v2296 = vmul.f32 %v2295, 1.442695
        %v2297 = vpow.pop %v2296
        %v2298 = vadd.f32 %v2297, 1.0
        %v2299 = vrcp.pop %v2298
        %v2300 = vmul.f32 1.0, %v2299
        %v2301 = vmul.f32 %v2270, %v2293
        %v2302 = vmul.f32 %v2301, %v2300
        %2303 = vadd.xlane.f32.xlu0 %v2302
        %v2304 = vpop.xlane.xlu0 %2303
        %v2305 = vrot.slane %v2304, 4
        %v2306 = vadd.f32 %v2304, %v2305
        %v2307 = vrot.slane %v2306, 2
        %v2308 = vadd.f32 %v2306, %v2307
        %v2309 = vrot.slane %v2308, 1
        %v2310 = vadd.f32 %v2308, %v2309
        %s2311 = vtos %v2310
        %v2312 = vstv %s2311
        %vm2313 = vcmask 0
        %2314 = vst.msk [vmem:[%s231] sm:$0x1] %vm2313, %v2312
        %s2315 = sand.u32 %s117, 1
        %s2316 = scalar_lea.sflag [#allocation3], %s2315
        %s2317 = sand.u32 %s117, 1
        %s2318 = smul.addr %s2317, 8
        %s2319 = scalar_lea.vmem [#allocation2], %s2318
        %p2320 = scmp.lt.s32.totalorder %s20, 1
        %s2321 = scalar_select %p2320, %s20, 1
        %s2322 = scalar_lea.vmem %s5, %s2321
        // Predicated region
        $region37: #{tpu_custom_call.1} parent=35 // pred_check
          %p2323 = pneg %p127
        $region38: #{tpu_custom_call.1} parent=35 // pred_check_branch
          %2325 = sbr.rel (%p2323) target = $region40
        $region39: #{tpu_custom_call.1} parent=35 // pred_region
          %s2327 = ssub.s32 128, 128
          %2328 = vsyncadd %s2316, %s2327
          %s2329 = smul.addr %s20, 128
          %s2330 = scalar_lea.hbm %s4, %s2329
          %s2332 = sshll.u32 %s2319, 4
          %s2333 = int_to_ptr.vmem [resolvable:$true] %s2332
          %2335 = dma.vmem_to_hbm [thread:$0]  %s2333, 128, %s2330, %s2316
        $region40: #{tpu_custom_call.1} parent=35 // pred_fallthru
          _
        // Predicated region
        $region41: #{tpu_custom_call.1} parent=35 // pred_check
          %p2336 = pneg %p153
        $region42: #{tpu_custom_call.1} parent=35 // pred_check_branch
          %2338 = sbr.rel (%p2336) target = $region44
        $region43: #{tpu_custom_call.1} parent=35 // pred_region
          _
        $region44: #{tpu_custom_call.1} parent=35 // pred_fallthru
          _
      $region36: #{tpu_custom_call.1} parent=5 // pred_fallthru
        _
      %p2339 = scmp.le.s32.totalorder 2, %s15
      // Predicated region
      $region45: #{tpu_custom_call.1} parent=5 // pred_check
        %p2340 = pneg %p2339
      $region46: #{tpu_custom_call.1} parent=5 // pred_check_branch
        %2342 = sbr.rel (%p2340) target = $region48
      $region47: #{tpu_custom_call.1} parent=5 // pred_region
        %s2343 = ssub.s32 %s15, 2
        // Predicated region
        $region49: #{tpu_custom_call.1} parent=47 // pred_check
          %p2344 = pneg %p133
        $region50: #{tpu_custom_call.1} parent=47 // pred_check_branch
          %2346 = sbr.rel (%p2344) target = $region52
        $region51: #{tpu_custom_call.1} parent=47 // pred_region
          %s2347 = sand.u32 %s118, 1
          %s2348 = scalar_lea.sflag [#allocation3], %s2347
          %s2349 = sand.u32 %s118, 1
          %s2350 = smul.addr %s2349, 8
          %s2351 = scalar_lea.vmem [#allocation2], %s2350
          %2352 = dma.done %s2348, 128
        $region52: #{tpu_custom_call.1} parent=47 // pred_fallthru
          _
        // Predicated region
        $region53: #{tpu_custom_call.1} parent=47 // pred_check
          %p2353 = pneg %p159
        $region54: #{tpu_custom_call.1} parent=47 // pred_check_branch
          %2355 = sbr.rel (%p2353) target = $region56
        $region55: #{tpu_custom_call.1} parent=47 // pred_region
          %p2356 = scmp.lt.s32.totalorder %s21, 1
          %s2357 = scalar_select %p2356, %s21, 1
          %s2358 = scalar_lea.vmem %s5, %s2357
        $region56: #{tpu_custom_call.1} parent=47 // pred_fallthru
          _
      $region48: #{tpu_custom_call.1} parent=5 // pred_fallthru
        _
    $region6: #{tpu_custom_call.1} parent=1 // loop_footer
      %s19 = sadd.s32 1, %s15
    $region7: #{tpu_custom_call.1} parent=1 // loop_footer_branch
      %14 = sbr.rel target = $region3
    $region8: #{tpu_custom_call.1} parent=1 // loop_exit
      _
    %2359 = vsyncpa [#allocation3], 1
    %s2360 = scalar_lea.sflag [#allocation3], 1
    %2361 = vsyncpa %s2360, 1

</llo_original>
